<compile_context>
chip_gen: v5e
topology: v5e:2x2
jax: 0.10.0
libtpu: 0.0.40
codegen_flags: <defaults>
</compile_context>

<pallas_src>
import jax
import jax.numpy as jnp
from jax.experimental import pallas as pl
from jax.experimental.pallas import tpu as pltpu


# ----------------------------- Pallas kernels ------------------------------ #

def _pointmlp_max_kernel(x_ref, w1_ref, b1_ref, w2_ref, b2_ref, w3_ref, b3_ref,
                         o_ref):
    """Fused conv1/2/3 (+folded BN, ReLU) and running max over point tiles."""
    j = pl.program_id(1)  # point-tile index (reduction axis)

    @pl.when(j == 0)
    def _():
        o_ref[...] = jnp.full(o_ref.shape, -jnp.inf, dtype=o_ref.dtype)

    x = x_ref[0]                                                   # (tn, K) bf16
    h = jnp.dot(x, w1_ref[...], preferred_element_type=jnp.float32) + b1_ref[...]
    h = jnp.maximum(h, 0.0)
    h = jnp.dot(h.astype(jnp.bfloat16), w2_ref[...],
                preferred_element_type=jnp.float32) + b2_ref[...]
    h = jnp.maximum(h, 0.0)
    h = jnp.dot(h.astype(jnp.bfloat16), w3_ref[...],
                preferred_element_type=jnp.float32) + b3_ref[...]
    h = jnp.maximum(h, 0.0)                                        # (tn, 1024) f32
    tile_max = jnp.max(h, axis=0, keepdims=True)                   # (1, 1024)
    o_ref[...] = jnp.maximum(o_ref[...], tile_max[None])           # (1, 1, 1024)


def pointmlp_global_max(x_bnk, w1, b1, w2, b2, w3, b3, *, tn=128):
    """x_bnk: (B, N, K) bf16 -> (B, 1024) f32 global feature (max over points)."""
    B, N, K = x_bnk.shape
    C3 = w3.shape[1]
    n_tiles = pl.cdiv(N, tn)
    Np = n_tiles * tn
    if Np != N:
        # Edge-replicate points so the per-batch max is unchanged by padding.
        pad = jnp.broadcast_to(x_bnk[:, -1:, :], (B, Np - N, K))
        x_bnk = jnp.concatenate([x_bnk, pad], axis=1)

    out = pl.pallas_call(
        _pointmlp_max_kernel,
        out_shape=jax.ShapeDtypeStruct((B, 1, C3), jnp.float32),
        grid=(B, n_tiles),
        in_specs=[
            pl.BlockSpec((1, tn, K), lambda b, j: (b, j, 0)),
            pl.BlockSpec(w1.shape, lambda b, j: (0, 0)),
            pl.BlockSpec(b1.shape, lambda b, j: (0, 0)),
            pl.BlockSpec(w2.shape, lambda b, j: (0, 0)),
            pl.BlockSpec(b2.shape, lambda b, j: (0, 0)),
            pl.BlockSpec(w3.shape, lambda b, j: (0, 0)),
            pl.BlockSpec(b3.shape, lambda b, j: (0, 0)),
        ],
        out_specs=pl.BlockSpec((1, 1, C3), lambda b, j: (b, 0, 0)),
        compiler_params=pltpu.CompilerParams(
            dimension_semantics=("parallel", "arbitrary")),
    )(x_bnk, w1, b1, w2, b2, w3, b3)
    return out.reshape(B, C3)


def _fc_head_kernel(g_ref, w1_ref, b1_ref, w2_ref, b2_ref, w3_ref, b3_ref,
                    iden_ref, o_ref):
    """Fused fc1(+bn4,relu) -> fc2(+bn5,relu) -> fc3 + identity."""
    h = jnp.dot(g_ref[...], w1_ref[...],
                preferred_element_type=jnp.float32) + b1_ref[...]
    h = jnp.maximum(h, 0.0)
    h = jnp.dot(h.astype(jnp.bfloat16), w2_ref[...],
                preferred_element_type=jnp.float32) + b2_ref[...]
    h = jnp.maximum(h, 0.0)
    h = jnp.dot(h.astype(jnp.bfloat16), w3_ref[...],
                preferred_element_type=jnp.float32) + b3_ref[...]
    o_ref[...] = h + iden_ref[...]


def fc_head(g, w1, b1, w2, b2, w3, b3, iden):
    """g: (B, 1024) bf16 -> (B, k*k) f32 (identity already added)."""
    B = g.shape[0]
    KK = w3.shape[1]
    args = (g, w1, b1, w2, b2, w3, b3, iden)
    return pl.pallas_call(
        _fc_head_kernel,
        out_shape=jax.ShapeDtypeStruct((B, KK), jnp.float32),
        grid=(1,),
        in_specs=[pl.BlockSpec(a.shape, lambda i: (0, 0)) for a in args],
        out_specs=pl.BlockSpec((B, KK), lambda i: (0, 0)),
        compiler_params=pltpu.CompilerParams(dimension_semantics=("arbitrary",)),
    )(*args)


# --------------------------- parameter handling ---------------------------- #

def _init_linear(key, cin, cout):
    kw, kb = jax.random.split(key)
    w = 0.1 * jax.random.normal(kw, (cout, cin), jnp.float32)
    b = 0.05 * jax.random.normal(kb, (cout,), jnp.float32)
    return w, b


def _init_bn(key, c):
    k1, k2, k3, k4 = jax.random.split(key, 4)
    gamma = 1.0 + 0.1 * jax.random.normal(k1, (c,), jnp.float32)
    beta = 0.05 * jax.random.normal(k2, (c,), jnp.float32)
    mean = 0.05 * jax.random.normal(k3, (c,), jnp.float32)
    var = 0.8 + 0.4 * jax.random.uniform(k4, (c,), jnp.float32)
    return gamma, beta, mean, var


def _fold_bn(w, b, bn, eps=1e-5):
    """Fold eval-mode BatchNorm1d into a (cout, cin) weight.

    Returns w (cin, cout) bf16 (MXU operand) and bias (1, cout) f32.
    """
    gamma, beta, mean, var = bn
    s = gamma / jnp.sqrt(var + eps)
    w_f = (w * s[:, None]).T
    b_f = s * (b - mean) + beta
    return w_f.astype(jnp.bfloat16), b_f.reshape(1, -1).astype(jnp.float32)


def init_params(key, k):
    keys = iter(jax.random.split(key, 32))

    def conv_bn(cin, cout):
        w, b = _init_linear(next(keys), cin, cout)
        return _fold_bn(w, b, _init_bn(next(keys), cout))

    def lin(cin, cout):
        w, b = _init_linear(next(keys), cin, cout)
        return w.T.astype(jnp.bfloat16), b.reshape(1, -1).astype(jnp.float32)

    p = {}
    p["conv1"] = conv_bn(k, 64)
    p["conv2"] = conv_bn(64, 128)
    p["conv3"] = conv_bn(128, 1024)
    p["fc1"] = conv_bn(1024, 512)
    p["fc2"] = conv_bn(512, 256)
    p["fc3"] = lin(256, k * k)
    return p


# ------------------------------ forward pass ------------------------------- #

def stnkd_forward(x, p, k):
    """x: (B, k, N) float32 (PyTorch NCL). Returns (B, k, k) transform."""
    B, C, N = x.shape
    x_bnk = jnp.transpose(x, (0, 2, 1)).astype(jnp.bfloat16)          # (B, N, k)
    g = pointmlp_global_max(x_bnk, *p["conv1"], *p["conv2"], *p["conv3"])
    iden = jnp.eye(k, dtype=jnp.float32).reshape(1, k * k)
    out = fc_head(g.astype(jnp.bfloat16), *p["fc1"], *p["fc2"], *p["fc3"], iden)
    return out.reshape(B, k, k)


# ----------------------- pure-JAX reference (check) ------------------------ #

def _reference(x, p, k):
    def lin(z, wb, relu=True):
        w, b = wb
        y = jnp.dot(z.astype(jnp.bfloat16), w,
                    preferred_element_type=jnp.float32) + b
        return jnp.maximum(y, 0.0) if relu else y

    B, C, N = x.shape
    pts = jnp.transpose(x, (0, 2, 1)).reshape(B * N, C)
    h = lin(pts, p["conv1"])
    h = lin(h, p["conv2"])
    h = lin(h, p["conv3"])
    g = jnp.max(h.reshape(B, N, -1), axis=1)
    h = lin(g, p["fc1"])
    h = lin(h, p["fc2"])
    t = lin(h, p["fc3"], relu=False)
    return t.reshape(B, k, k) + jnp.eye(k, dtype=jnp.float32)[None]


# ---------------------------------- main ----------------------------------- #

if __name__ == "__main__":
    key = jax.random.PRNGKey(0)
    kx, kp = jax.random.split(key)

    # STNkd default k=64; 256 points keeps the 128-row point tiles MXU-friendly
    # while staying small.
    B, k, N = 2, 64, 256
    x = jax.random.normal(kx, (B, k, N), jnp.float32)
    params = init_params(kp, k)

    out = stnkd_forward(x, params, k)
    jax.block_until_ready(out)

    ref = _reference(x, params, k)
    assert out.shape == (B, k, k)
    assert ref.shape == (B, k, k)
    assert jnp.allclose(out, ref, atol=2e-2, rtol=2e-2), float(
        jnp.max(jnp.abs(out - ref)))

    print("KERNEL_OK")
</pallas_src>

<mosaic_0001>
module attributes {stable_mosaic.version = 11 : i64} {
  func.func @_pointmlp_max_kernel(%arg0: i32, %arg1: i32, %arg2: memref<1x128x64xbf16, #tpu.memory_space<vmem>>, %arg3: memref<64x64xbf16, #tpu.memory_space<vmem>>, %arg4: memref<1x64xf32, #tpu.memory_space<vmem>>, %arg5: memref<64x128xbf16, #tpu.memory_space<vmem>>, %arg6: memref<1x128xf32, #tpu.memory_space<vmem>>, %arg7: memref<128x1024xbf16, #tpu.memory_space<vmem>>, %arg8: memref<1x1024xf32, #tpu.memory_space<vmem>>, %arg9: memref<1x1x1024xf32, #tpu.memory_space<vmem>>) attributes {dimension_semantics = [#tpu.dimension_semantics<parallel>, #tpu.dimension_semantics<arbitrary>], iteration_bounds = array<i64: 2, 2>, scalar_prefetch = 0 : i64, scratch_operands = 0 : i64, tpu.core_type = #tpu.core_type<tc>, window_params = [{transform_indices = @transform_0, window_bounds = array<i64: 1, 128, 64>}, {pipeline_mode = #tpu.pipeline_mode<synchronous>, transform_indices = @transform_1, window_bounds = array<i64: 64, 64>}, {pipeline_mode = #tpu.pipeline_mode<synchronous>, transform_indices = @transform_2, window_bounds = array<i64: 1, 64>}, {pipeline_mode = #tpu.pipeline_mode<synchronous>, transform_indices = @transform_3, window_bounds = array<i64: 64, 128>}, {pipeline_mode = #tpu.pipeline_mode<synchronous>, transform_indices = @transform_4, window_bounds = array<i64: 1, 128>}, {pipeline_mode = #tpu.pipeline_mode<synchronous>, transform_indices = @transform_5, window_bounds = array<i64: 128, 1024>}, {pipeline_mode = #tpu.pipeline_mode<synchronous>, transform_indices = @transform_6, window_bounds = array<i64: 1, 1024>}, {transform_indices = @transform_7, window_bounds = array<i64: 1, 1, 1024>}]} {
    %c0_i32 = arith.constant 0 : i32
    %0 = arith.cmpi eq, %arg1, %c0_i32 : i32
    %1 = arith.extui %0 : i1 to i32
    %c0_i32_0 = arith.constant 0 : i32
    %2 = arith.cmpi ne, %1, %c0_i32_0 : i32
    scf.if %2 {
      %cst_27 = arith.constant 0xFF800000 : f32
      %34 = vector.broadcast %cst_27 : f32 to vector<1x1x1024xf32>
      %c0_28 = arith.constant 0 : index
      %c0_29 = arith.constant 0 : index
      %c0_30 = arith.constant 0 : index
      %35 = vector.load %arg9[%c0_28, %c0_29, %c0_30] : memref<1x1x1024xf32, #tpu.memory_space<vmem>>, vector<1x1x1024xf32>
      tpu.vector_store %arg9[%c0_28, %c0_29, %c0_30], %34 {strides = array<i32>} : memref<1x1x1024xf32, #tpu.memory_space<vmem>>, vector<1x1x1024xf32>,
    } else {
    }
    %c0 = arith.constant 0 : index
    %c0_1 = arith.constant 0 : index
    %c0_2 = arith.constant 0 : index
    %3 = vector.load %arg2[%c0, %c0_1, %c0_2] : memref<1x128x64xbf16, #tpu.memory_space<vmem>>, vector<1x128x64xbf16>
    %4 = vector.shape_cast %3 : vector<1x128x64xbf16> to vector<128x64xbf16>
    %c0_3 = arith.constant 0 : index
    %c0_4 = arith.constant 0 : index
    %5 = vector.load %arg3[%c0_3, %c0_4] : memref<64x64xbf16, #tpu.memory_space<vmem>>, vector<64x64xbf16>
    %cst = arith.constant dense<0.000000e+00> : vector<128x64xf32>
    %6 = tpu.matmul %4, %5, %cst {dimension_numbers = #tpu.dot_dimension_numbers<[1], [0], [0], [1], [0, 0, 1, 1], [], []>} : vector<128x64xbf16>, vector<64x64xbf16>, vector<128x64xf32> -> vector<128x64xf32>
    %c0_5 = arith.constant 0 : index
    %c0_6 = arith.constant 0 : index
    %7 = vector.load %arg4[%c0_5, %c0_6] : memref<1x64xf32, #tpu.memory_space<vmem>>, vector<1x64xf32>
    %8 = vector.broadcast %7 : vector<1x64xf32> to vector<128x64xf32>
    %9 = arith.addf %6, %8 : vector<128x64xf32>
    %cst_7 = arith.constant 0.000000e+00 : f32
    %10 = vector.broadcast %cst_7 : f32 to vector<128x64xf32>
    %11 = arith.maximumf %9, %10 : vector<128x64xf32>
    %12 = arith.truncf %11 : vector<128x64xf32> to vector<128x64xbf16>
    %c0_8 = arith.constant 0 : index
    %c0_9 = arith.constant 0 : index
    %13 = vector.load %arg5[%c0_8, %c0_9] : memref<64x128xbf16, #tpu.memory_space<vmem>>, vector<64x128xbf16>
    %cst_10 = arith.constant dense<0.000000e+00> : vector<128x128xf32>
    %14 = tpu.matmul %12, %13, %cst_10 {dimension_numbers = #tpu.dot_dimension_numbers<[1], [0], [0], [1], [0, 0, 1, 1], [], []>} : vector<128x64xbf16>, vector<64x128xbf16>, vector<128x128xf32> -> vector<128x128xf32>
    %c0_11 = arith.constant 0 : index
    %c0_12 = arith.constant 0 : index
    %15 = vector.load %arg6[%c0_11, %c0_12] : memref<1x128xf32, #tpu.memory_space<vmem>>, vector<1x128xf32>
    %16 = vector.broadcast %15 : vector<1x128xf32> to vector<128x128xf32>
    %17 = arith.addf %14, %16 : vector<128x128xf32>
    %cst_13 = arith.constant 0.000000e+00 : f32
    %18 = vector.broadcast %cst_13 : f32 to vector<128x128xf32>
    %19 = arith.maximumf %17, %18 : vector<128x128xf32>
    %20 = arith.truncf %19 : vector<128x128xf32> to vector<128x128xbf16>
    %c0_14 = arith.constant 0 : index
    %c0_15 = arith.constant 0 : index
    %21 = vector.load %arg7[%c0_14, %c0_15] : memref<128x1024xbf16, #tpu.memory_space<vmem>>, vector<128x1024xbf16>
    %cst_16 = arith.constant dense<0.000000e+00> : vector<128x1024xf32>
    %22 = tpu.matmul %20, %21, %cst_16 {dimension_numbers = #tpu.dot_dimension_numbers<[1], [0], [0], [1], [0, 0, 1, 1], [], []>} : vector<128x128xbf16>, vector<128x1024xbf16>, vector<128x1024xf32> -> vector<128x1024xf32>
    %c0_17 = arith.constant 0 : index
    %c0_18 = arith.constant 0 : index
    %23 = vector.load %arg8[%c0_17, %c0_18] : memref<1x1024xf32, #tpu.memory_space<vmem>>, vector<1x1024xf32>
    %24 = vector.broadcast %23 : vector<1x1024xf32> to vector<128x1024xf32>
    %25 = arith.addf %22, %24 : vector<128x1024xf32>
    %cst_19 = arith.constant 0.000000e+00 : f32
    %26 = vector.broadcast %cst_19 : f32 to vector<128x1024xf32>
    %27 = arith.maximumf %25, %26 : vector<128x1024xf32>
    %cst_20 = arith.constant dense<0xFF800000> : vector<1024xf32>
    %28 = vector.multi_reduction <maximumf>, %27, %cst_20 [0] : vector<128x1024xf32> to vector<1024xf32>
    %29 = vector.shape_cast %28 : vector<1024xf32> to vector<1x1024xf32>
    %c0_21 = arith.constant 0 : index
    %c0_22 = arith.constant 0 : index
    %c0_23 = arith.constant 0 : index
    %30 = vector.load %arg9[%c0_21, %c0_22, %c0_23] : memref<1x1x1024xf32, #tpu.memory_space<vmem>>, vector<1x1x1024xf32>
    %31 = vector.shape_cast %29 : vector<1x1024xf32> to vector<1x1x1024xf32>
    %32 = arith.maximumf %30, %31 : vector<1x1x1024xf32>
    %c0_24 = arith.constant 0 : index
    %c0_25 = arith.constant 0 : index
    %c0_26 = arith.constant 0 : index
    %33 = vector.load %arg9[%c0_24, %c0_25, %c0_26] : memref<1x1x1024xf32, #tpu.memory_space<vmem>>, vector<1x1x1024xf32>
    tpu.vector_store %arg9[%c0_24, %c0_25, %c0_26], %32 {strides = array<i32>} : memref<1x1x1024xf32, #tpu.memory_space<vmem>>, vector<1x1x1024xf32>,
    return
  }
  func.func @transform_0(%arg0: i32, %arg1: i32) -> (i32, i32, i32) {
    %c0_i32 = arith.constant 0 : i32
    %c0_i32_0 = arith.constant 0 : i32
    return %arg0, %arg1, %c0_i32 : i32, i32, i32
  }
  func.func @transform_1(%arg0: i32, %arg1: i32) -> (i32, i32) {
    %c0_i32 = arith.constant 0 : i32
    %c0_i32_0 = arith.constant 0 : i32
    %c0_i32_1 = arith.constant 0 : i32
    return %c0_i32, %c0_i32_0 : i32, i32
  }
  func.func @transform_2(%arg0: i32, %arg1: i32) -> (i32, i32) {
    %c0_i32 = arith.constant 0 : i32
    %c0_i32_0 = arith.constant 0 : i32
    %c0_i32_1 = arith.constant 0 : i32
    return %c0_i32, %c0_i32_0 : i32, i32
  }
  func.func @transform_3(%arg0: i32, %arg1: i32) -> (i32, i32) {
    %c0_i32 = arith.constant 0 : i32
    %c0_i32_0 = arith.constant 0 : i32
    %c0_i32_1 = arith.constant 0 : i32
    return %c0_i32, %c0_i32_0 : i32, i32
  }
  func.func @transform_4(%arg0: i32, %arg1: i32) -> (i32, i32) {
    %c0_i32 = arith.constant 0 : i32
    %c0_i32_0 = arith.constant 0 : i32
    %c0_i32_1 = arith.constant 0 : i32
    return %c0_i32, %c0_i32_0 : i32, i32
  }
  func.func @transform_5(%arg0: i32, %arg1: i32) -> (i32, i32) {
    %c0_i32 = arith.constant 0 : i32
    %c0_i32_0 = arith.constant 0 : i32
    %c0_i32_1 = arith.constant 0 : i32
    return %c0_i32, %c0_i32_0 : i32, i32
  }
  func.func @transform_6(%arg0: i32, %arg1: i32) -> (i32, i32) {
    %c0_i32 = arith.constant 0 : i32
    %c0_i32_0 = arith.constant 0 : i32
    %c0_i32_1 = arith.constant 0 : i32
    return %c0_i32, %c0_i32_0 : i32, i32
  }
  func.func @transform_7(%arg0: i32, %arg1: i32) -> (i32, i32, i32) {
    %c0_i32 = arith.constant 0 : i32
    %c0_i32_0 = arith.constant 0 : i32
    %c0_i32_1 = arith.constant 0 : i32
    return %arg0, %c0_i32, %c0_i32_0 : i32, i32, i32
  }
}

</mosaic_0001>

<llo_original>
// kernel: tpu_custom_call.1
$region0: #{tpu_custom_call.1}
  #allocation0 [shape = 'u32[]', space=smem, size = 0x4, offset = 0x4, fixed_abs, tag = 'smem constant byte address 0x4 - core index']
  #allocation1 [shape = 'u32[72,128]{1,0:T(1,128)}', space=vmem, size = 0x9000, scoped, tag = 'internal scratch']
  %s0 = inlined_call_operand.vmem [shape: bf16[2,256,64], index: 0, kind: input, shape index: {}]
  %s1 = inlined_call_operand.vmem [shape: bf16[64,64], index: 1, kind: input, shape index: {}]
  %s2 = inlined_call_operand.vmem [shape: f32[1,64], index: 2, kind: input, shape index: {}]
  %s3 = inlined_call_operand.vmem [shape: bf16[64,128], index: 3, kind: input, shape index: {}]
  %s4 = inlined_call_operand.vmem [shape: f32[1,128], index: 4, kind: input, shape index: {}]
  %s5 = inlined_call_operand.hbm [shape: bf16[128,1024], index: 5, kind: input, shape index: {}]
  %s6 = inlined_call_operand.vmem [shape: f32[1,1024], index: 6, kind: input, shape index: {}]
  %s7 = inlined_call_operand.hbm [shape: f32[2,1,1024], index: 7, kind: output, shape index: {}]
  %s8 = sld [smem:[#allocation0]]
  $region69: #{tpu_custom_call.1} parent=0
    _
  %s10 = ssub.s32 1, %s8
  %s11 = scalar_select 0, %s10, %s8
  $region1: #{tpu_custom_call.1} parent=0
    #allocation2 [shape = 'u8[262144]{0}', space=vmem, size = 0x40000, scoped, tag = 'input window, operand 5, single buffered']
    #allocation3 [shape = 's32[2]{0}', space=sflag, size = 0x8, scoped, tag = 'scoped memory for tpu_custom_call.1']
    #allocation4 [shape = 's32[2]{0}', space=sflag, size = 0x8, scoped, tag = 'scoped memory for tpu_custom_call.1']
    #allocation5 [shape = 'u8[8192]{0}', space=vmem, size = 0x2000, scoped, tag = 'output window, operand 0']
    %12 = vsyncpa [#allocation3], 0
    %13 = vsyncpa [#allocation4], 0
    %s14 = scalar_lea.sflag [#allocation4], 1
    %15 = vsyncpa %s14, 0
    loop: start=0, step=1, limit=6
    $region2: #{tpu_custom_call.1} parent=1 // loop_pre_header
      _
    $region3: #{tpu_custom_call.1} parent=1 // loop_header
      %s17 = sphi 0, %s21
      %p18 = scmp.ge.s32.totalorder %s17, 6
      %s24 = sphi 0, %s36
      %s25 = sphi 0, %s32
      %s26 = sphi 0, %s24
      %s27 = sphi 0, %s25
      %s28 = sphi 0, %s26
      %s29 = sphi 0, %s27
      %s41 = sphi 0, %s43
      %s44 = sphi 0, %s41
      %s45 = sphi 0, %s44
      %s61 = sphi 0, %s45
      %s65 = sphi 0, %s65
      %s67 = sphi 0, %s65
      %s68 = sphi 0, %s67
      %s82 = sphi 0, %s68
      %s86 = sphi 0, %s86
      %s88 = sphi 0, %s86
      %s89 = sphi 0, %s88
      %s103 = sphi 0, %s89
      %s107 = sphi 0, %s107
      %s109 = sphi 0, %s107
      %s110 = sphi 0, %s109
      %s124 = sphi 0, %s110
      %s128 = sphi 0, %s128
      %s130 = sphi 0, %s128
      %s131 = sphi 0, %s130
      %s145 = sphi 0, %s131
      %s149 = sphi 0, %s149
      %s151 = sphi 0, %s149
      %s152 = sphi 0, %s151
      %s166 = sphi 0, %s152
      %s170 = sphi 0, %s170
      %s172 = sphi 0, %s170
      %s173 = sphi 0, %s172
      %s187 = sphi 0, %s173
      %s193 = sphi 0, %s195
      %s196 = sphi 0, %s193
      %s197 = sphi 0, %s196
      %s213 = sphi 0, %s197
    $region4: #{tpu_custom_call.1} parent=1 // loop_header_branch
      %20 = sbr.rel (%p18) target = $region8
    $region5: #{tpu_custom_call.1} parent=1 // loop_body
      %s22 = ssub.s32 %s17, 1
      %s23 = ssub.s32 %s17, 2
      %s30 = sadd.s32 1, %s25
      %p31 = scmp.ge.s32.totalorder %s30, 2
      %s32 = scalar_select %p31, 0, %s30
      %s33 = sadd.s32 1, %s24
      %s34 = scalar_select %p31, %s33, %s24
      %p35 = scmp.ge.s32.totalorder %s34, 2
      %s36 = scalar_select %p35, 0, %s34
      %s37 = ssub.s32 %s24, %s36
      %s38 = ssub.s32 %s25, %s32
      %s39 = sor.u32 %s37, %s38
      %p40 = scmp.eq.s32.totalorder %s39, 0
      %s42 = sadd.s32 %s41, 1
      %s43 = scalar_select %p40, %s41, %s42
      %p46 = pneg %p40
      %p47 = scmp.eq.s32.totalorder %s17, 3
      %p48 = por %p46, %p47
      %p49 = scmp.ne.s32.totalorder %s41, %s44
      %p50 = scmp.eq.s32.totalorder %s17, 0
      %p51 = por %p49, %p50
      %p52 = scmp.ne.s32.totalorder %s41, %s44
      %p53 = scmp.eq.s32.totalorder %s22, 3
      %p54 = por %p52, %p53
      %p55 = scmp.ne.s32.totalorder %s44, %s45
      %p56 = scmp.eq.s32.totalorder %s22, 0
      %p57 = por %p55, %p56
      %p58 = scmp.ne.s32.totalorder %s44, %s45
      %p59 = scmp.eq.s32.totalorder %s23, 3
      %p60 = por %p58, %p59
      %p62 = scmp.ne.s32.totalorder %s45, %s61
      %p63 = scmp.eq.s32.totalorder %s23, 0
      %p64 = por %p62, %p63
      %s66 = sadd.s32 %s65, 1
      %p69 = scmp.eq.s32.totalorder %s17, 3
      %p70 = scmp.ne.s32.totalorder %s65, %s67
      %p71 = scmp.eq.s32.totalorder %s17, 0
      %p72 = por %p70, %p71
      %p73 = scmp.ne.s32.totalorder %s65, %s67
      %p74 = scmp.eq.s32.totalorder %s22, 3
      %p75 = por %p73, %p74
      %p76 = scmp.ne.s32.totalorder %s67, %s68
      %p77 = scmp.eq.s32.totalorder %s22, 0
      %p78 = por %p76, %p77
      %p79 = scmp.ne.s32.totalorder %s67, %s68
      %p80 = scmp.eq.s32.totalorder %s23, 3
      %p81 = por %p79, %p80
      %p83 = scmp.ne.s32.totalorder %s68, %s82
      %p84 = scmp.eq.s32.totalorder %s23, 0
      %p85 = por %p83, %p84
      %s87 = sadd.s32 %s86, 1
      %p90 = scmp.eq.s32.totalorder %s17, 3
      %p91 = scmp.ne.s32.totalorder %s86, %s88
      %p92 = scmp.eq.s32.totalorder %s17, 0
      %p93 = por %p91, %p92
      %p94 = scmp.ne.s32.totalorder %s86, %s88
      %p95 = scmp.eq.s32.totalorder %s22, 3
      %p96 = por %p94, %p95
      %p97 = scmp.ne.s32.totalorder %s88, %s89
      %p98 = scmp.eq.s32.totalorder %s22, 0
      %p99 = por %p97, %p98
      %p100 = scmp.ne.s32.totalorder %s88, %s89
      %p101 = scmp.eq.s32.totalorder %s23, 3
      %p102 = por %p100, %p101
      %p104 = scmp.ne.s32.totalorder %s89, %s103
      %p105 = scmp.eq.s32.totalorder %s23, 0
      %p106 = por %p104, %p105
      %s108 = sadd.s32 %s107, 1
      %p111 = scmp.eq.s32.totalorder %s17, 3
      %p112 = scmp.ne.s32.totalorder %s107, %s109
      %p113 = scmp.eq.s32.totalorder %s17, 0
      %p114 = por %p112, %p113
      %p115 = scmp.ne.s32.totalorder %s107, %s109
      %p116 = scmp.eq.s32.totalorder %s22, 3
      %p117 = por %p115, %p116
      %p118 = scmp.ne.s32.totalorder %s109, %s110
      %p119 = scmp.eq.s32.totalorder %s22, 0
      %p120 = por %p118, %p119
      %p121 = scmp.ne.s32.totalorder %s109, %s110
      %p122 = scmp.eq.s32.totalorder %s23, 3
      %p123 = por %p121, %p122
      %p125 = scmp.ne.s32.totalorder %s110, %s124
      %p126 = scmp.eq.s32.totalorder %s23, 0
      %p127 = por %p125, %p126
      %s129 = sadd.s32 %s128, 1
      %p132 = scmp.eq.s32.totalorder %s17, 3
      %p133 = scmp.ne.s32.totalorder %s128, %s130
      %p134 = scmp.eq.s32.totalorder %s17, 0
      %p135 = por %p133, %p134
      %p136 = scmp.ne.s32.totalorder %s128, %s130
      %p137 = scmp.eq.s32.totalorder %s22, 3
      %p138 = por %p136, %p137
      %p139 = scmp.ne.s32.totalorder %s130, %s131
      %p140 = scmp.eq.s32.totalorder %s22, 0
      %p141 = por %p139, %p140
      %p142 = scmp.ne.s32.totalorder %s130, %s131
      %p143 = scmp.eq.s32.totalorder %s23, 3
      %p144 = por %p142, %p143
      %p146 = scmp.ne.s32.totalorder %s131, %s145
      %p147 = scmp.eq.s32.totalorder %s23, 0
      %p148 = por %p146, %p147
      %s150 = sadd.s32 %s149, 1
      %p153 = scmp.eq.s32.totalorder %s17, 3
      %p154 = scmp.ne.s32.totalorder %s149, %s151
      %p155 = scmp.eq.s32.totalorder %s17, 0
      %p156 = por %p154, %p155
      %p157 = scmp.ne.s32.totalorder %s149, %s151
      %p158 = scmp.eq.s32.totalorder %s22, 3
      %p159 = por %p157, %p158
      %p160 = scmp.ne.s32.totalorder %s151, %s152
      %p161 = scmp.eq.s32.totalorder %s22, 0
      %p162 = por %p160, %p161
      %p163 = scmp.ne.s32.totalorder %s151, %s152
      %p164 = scmp.eq.s32.totalorder %s23, 3
      %p165 = por %p163, %p164
      %p167 = scmp.ne.s32.totalorder %s152, %s166
      %p168 = scmp.eq.s32.totalorder %s23, 0
      %p169 = por %p167, %p168
      %s171 = sadd.s32 %s170, 1
      %p174 = scmp.eq.s32.totalorder %s17, 3
      %p175 = scmp.ne.s32.totalorder %s170, %s172
      %p176 = scmp.eq.s32.totalorder %s17, 0
      %p177 = por %p175, %p176
      %p178 = scmp.ne.s32.totalorder %s170, %s172
      %p179 = scmp.eq.s32.totalorder %s22, 3
      %p180 = por %p178, %p179
      %p181 = scmp.ne.s32.totalorder %s172, %s173
      %p182 = scmp.eq.s32.totalorder %s22, 0
      %p183 = por %p181, %p182
      %p184 = scmp.ne.s32.totalorder %s172, %s173
      %p185 = scmp.eq.s32.totalorder %s23, 3
      %p186 = por %p184, %p185
      %p188 = scmp.ne.s32.totalorder %s173, %s187
      %p189 = scmp.eq.s32.totalorder %s23, 0
      %p190 = por %p188, %p189
      %s191 = ssub.s32 %s24, %s36
      %p192 = scmp.eq.s32.totalorder %s191, 0
      %s194 = sadd.s32 %s193, 1
      %s195 = scalar_select %p192, %s193, %s194
      %p198 = pneg %p192
      %p199 = scmp.eq.s32.totalorder %s17, 3
      %p200 = por %p198, %p199
      %p201 = scmp.ne.s32.totalorder %s193, %s196
      %p202 = scmp.eq.s32.totalorder %s17, 0
      %p203 = por %p201, %p202
      %p204 = scmp.ne.s32.totalorder %s193, %s196
      %p205 = scmp.eq.s32.totalorder %s22, 3
      %p206 = por %p204, %p205
      %p207 = scmp.ne.s32.totalorder %s196, %s197
      %p208 = scmp.eq.s32.totalorder %s22, 0
      %p209 = por %p207, %p208
      %p210 = scmp.ne.s32.totalorder %s196, %s197
      %p211 = scmp.eq.s32.totalorder %s23, 3
      %p212 = por %p210, %p211
      %p214 = scmp.ne.s32.totalorder %s197, %s213
      %p215 = scmp.eq.s32.totalorder %s23, 0
      %p216 = por %p214, %p215
      %p217 = scmp.le.s32.totalorder 1, %s17
      %p218 = scmp.lt.s32.totalorder %s17, 5
      %p219 = pnand %p217, %p218
      %p220 = pneg %p219
      // Predicated region
      $region9: #{tpu_custom_call.1} parent=5 // pred_check
        _
      $region10: #{tpu_custom_call.1} parent=5 // pred_check_branch
        %222 = sbr.rel (%p219) target = $region12
      $region11: #{tpu_custom_call.1} parent=5 // pred_region
        %s223 = ssub.s32 %s17, 1
        // Predicated region
        $region13: #{tpu_custom_call.1} parent=11 // pred_check
          %p224 = pneg %p78
        $region14: #{tpu_custom_call.1} parent=11 // pred_check_branch
          %226 = sbr.rel (%p224) target = $region16
        $region15: #{tpu_custom_call.1} parent=11 // pred_region
          _
        $region16: #{tpu_custom_call.1} parent=11 // pred_fallthru
          _
        // Predicated region
        $region17: #{tpu_custom_call.1} parent=11 // pred_check
          %p227 = pneg %p99
        $region18: #{tpu_custom_call.1} parent=11 // pred_check_branch
          %229 = sbr.rel (%p227) target = $region20
        $region19: #{tpu_custom_call.1} parent=11 // pred_region
          _
        $region20: #{tpu_custom_call.1} parent=11 // pred_fallthru
          _
        // Predicated region
        $region21: #{tpu_custom_call.1} parent=11 // pred_check
          %p230 = pneg %p120
        $region22: #{tpu_custom_call.1} parent=11 // pred_check_branch
          %232 = sbr.rel (%p230) target = $region24
        $region23: #{tpu_custom_call.1} parent=11 // pred_region
          _
        $region24: #{tpu_custom_call.1} parent=11 // pred_fallthru
          _
        // Predicated region
        $region25: #{tpu_custom_call.1} parent=11 // pred_check
          %p233 = pneg %p141
        $region26: #{tpu_custom_call.1} parent=11 // pred_check_branch
          %235 = sbr.rel (%p233) target = $region28
        $region27: #{tpu_custom_call.1} parent=11 // pred_region
          _
        $region28: #{tpu_custom_call.1} parent=11 // pred_fallthru
          _
        // Predicated region
        $region29: #{tpu_custom_call.1} parent=11 // pred_check
          %p236 = pneg %p162
        $region30: #{tpu_custom_call.1} parent=11 // pred_check_branch
          %238 = sbr.rel (%p236) target = $region32
        $region31: #{tpu_custom_call.1} parent=11 // pred_region
          %240 = vsyncadd [#allocation3], 0
          %s241 = sshll.u32 %s5, 4
          %s242 = int_to_ptr.hbm [resolvable:$true] %s241
          %s243 = sshll.u32 [#allocation2], 4
          %s244 = int_to_ptr.vmem [resolvable:$true] %s243
          %249 = dma.hbm_to_vmem [thread:$0]  %s242, 8192, %s244, [#allocation3], 512, 512, 32
        $region32: #{tpu_custom_call.1} parent=11 // pred_fallthru
          _
        // Predicated region
        $region33: #{tpu_custom_call.1} parent=11 // pred_check
          %p250 = pneg %p183
        $region34: #{tpu_custom_call.1} parent=11 // pred_check_branch
          %252 = sbr.rel (%p250) target = $region36
        $region35: #{tpu_custom_call.1} parent=11 // pred_region
          _
        $region36: #{tpu_custom_call.1} parent=11 // pred_fallthru
          _
      $region12: #{tpu_custom_call.1} parent=5 // pred_fallthru
        _
      %p253 = scmp.lt.s32.totalorder %s17, 4
      // Predicated region
      $region37: #{tpu_custom_call.1} parent=5 // pred_check
        %p254 = pneg %p253
      $region38: #{tpu_custom_call.1} parent=5 // pred_check_branch
        %256 = sbr.rel (%p254) target = $region40
      $region39: #{tpu_custom_call.1} parent=5 // pred_region
        // Predicated region
        $region41: #{tpu_custom_call.1} parent=39 // pred_check
          %p257 = pneg %p51
        $region42: #{tpu_custom_call.1} parent=39 // pred_check_branch
          %259 = sbr.rel (%p257) target = $region44
        $region43: #{tpu_custom_call.1} parent=39 // pred_region
          %s260 = smul.u32 16, %s25
          %p261 = scmp.lt.s32.totalorder %s24, 1
          %s262 = scalar_select %p261, %s24, 1
          %p263 = scmp.lt.s32.totalorder %s260, 31
          %s264 = scalar_select %p263, %s260, 31
          %s265 = smul.addr %s262, 32
          %s266 = sadd.s32 %s264, %s265
          %s267 = smul.addr %s266, 4
          %s268 = scalar_lea.vmem %s0, %s267
          %s269 = smul.u32 16, %s25
        $region44: #{tpu_custom_call.1} parent=39 // pred_fallthru
          _
      $region40: #{tpu_custom_call.1} parent=5 // pred_fallthru
        _
      %p270 = scmp.le.s32.totalorder 1, %s17
      %p271 = scmp.lt.s32.totalorder %s17, 5
      %p272 = pnand %p270, %p271
      %p273 = pneg %p272
      // Predicated region
      $region45: #{tpu_custom_call.1} parent=5 // pred_check
        _
      $region46: #{tpu_custom_call.1} parent=5 // pred_check_branch
        %275 = sbr.rel (%p272) target = $region48
      $region47: #{tpu_custom_call.1} parent=5 // pred_region
        %s276 = ssub.s32 %s17, 1
        // Predicated region
        $region49: #{tpu_custom_call.1} parent=47 // pred_check
          %p277 = pneg %p162
        $region50: #{tpu_custom_call.1} parent=47 // pred_check_branch
          %279 = sbr.rel (%p277) target = $region52
        $region51: #{tpu_custom_call.1} parent=47 // pred_region
          %281 = dma.done [#allocation3], 8192
        $region52: #{tpu_custom_call.1} parent=47 // pred_fallthru
          _
        %s282 = smul.u32 16, %s27
        %p283 = scmp.lt.s32.totalorder %s26, 1
        %s284 = scalar_select %p283, %s26, 1
        %p285 = scmp.lt.s32.totalorder %s282, 31
        %s286 = scalar_select %p285, %s282, 31
        %s287 = smul.addr %s284, 32
        %s288 = sadd.s32 %s286, %s287
        %s289 = smul.addr %s288, 4
        %s290 = scalar_lea.vmem %s0, %s289
        %p291 = pneg %p57
        %p292 = pneg %p54
        %p293 = pneg %p78
        %p294 = pneg %p75
        %p295 = pneg %p99
        %p296 = pneg %p96
        %p297 = pneg %p120
        %p298 = pneg %p117
        %p299 = pneg %p141
        %p300 = pneg %p138
        %p301 = pneg %p162
        %p302 = pneg %p159
        %p303 = pneg %p183
        %p304 = pneg %p180
        %p305 = pneg %p209
        %p306 = pneg %p206
        %s307 = sand.u32 %s196, 1
        %s308 = scalar_lea.sflag [#allocation4], %s307
        %s309 = sand.u32 %s196, 1
        %s310 = smul.addr %s309, 8
        %s311 = scalar_lea.vmem [#allocation5], %s310
        %s312 = smul.u32 16, %s27
        %p313 = scmp.lt.s32.totalorder %s26, 1
        %s314 = scalar_select %p313, %s26, 1
        %p315 = scmp.lt.s32.totalorder %s312, 31
        %s316 = scalar_select %p315, %s312, 31
        %s317 = smul.addr %s314, 32
        %s318 = sadd.s32 %s316, %s317
        %s319 = smul.addr %s318, 4
        %s320 = scalar_lea.vmem %s0, %s319
        %s321 = smul.u32 16, %s27
        %p323 = scmp.eq.s32.totalorder %s27, 0
        // Predicated region
        $region53: #{tpu_custom_call.1} parent=47 // pred_check
          %p324 = pneg %p323
        $region54: #{tpu_custom_call.1} parent=47 // pred_check_branch
          %326 = sbr.rel (%p324) target = $region56
        $region55: #{tpu_custom_call.1} parent=47 // pred_region
          %327 = vst [vmem:[%s311] sm:$0xff] -inf
        $region56: #{tpu_custom_call.1} parent=47 // pred_fallthru
          _
        %v328 = vld [vmem:[%s320] sm:$0xf]
        %v329 = vld [vmem:[%s320 + $0x4] sm:$0xf]
        %v330 = vld [vmem:[%s320 + $0x8] sm:$0xf]
        %v331 = vld [vmem:[%s320 + $0xc] sm:$0xf]
        %v332 = vld [vmem:[%s320 + $0x10] sm:$0xf]
        %v333 = vld [vmem:[%s320 + $0x14] sm:$0xf]
        %v334 = vld [vmem:[%s320 + $0x18] sm:$0xf]
        %v335 = vld [vmem:[%s320 + $0x1c] sm:$0xf]
        %v336 = vld [vmem:[%s320 + $0x20] sm:$0xf]
        %v337 = vld [vmem:[%s320 + $0x24] sm:$0xf]
        %v338 = vld [vmem:[%s320 + $0x28] sm:$0xf]
        %v339 = vld [vmem:[%s320 + $0x2c] sm:$0xf]
        %v340 = vld [vmem:[%s320 + $0x30] sm:$0xf]
        %v341 = vld [vmem:[%s320 + $0x34] sm:$0xf]
        %v342 = vld [vmem:[%s320 + $0x38] sm:$0xf]
        %v343 = vld [vmem:[%s320 + $0x3c] sm:$0xf]
        %v344 = vld [vmem:[%s1] sm:$0xf]
        %v345 = vld [vmem:[%s1 + $0x4] sm:$0xf]
        %v346 = vld [vmem:[%s1 + $0x8] sm:$0xf]
        %v347 = vld [vmem:[%s1 + $0xc] sm:$0xf]
        %v348 = vld [vmem:[%s1 + $0x10] sm:$0xf]
        %v349 = vld [vmem:[%s1 + $0x14] sm:$0xf]
        %v350 = vld [vmem:[%s1 + $0x18] sm:$0xf]
        %v351 = vld [vmem:[%s1 + $0x1c] sm:$0xf]
        %v352 = vld [vmem:[%s2] sm:$0x1]
        %v354 = vperm.slane %v352, 0
        %v372 = vunpack.c.l.b16 %v328
        %v373 = vunpack.c.l.b16 %v329
        %v374 = vunpack.c.l.b16 %v330
        %v375 = vunpack.c.l.b16 %v331
        %v376 = vunpack.c.l.b16 %v332
        %v377 = vunpack.c.l.b16 %v333
        %v378 = vunpack.c.l.b16 %v334
        %v379 = vunpack.c.l.b16 %v335
        %v380 = vunpack.c.l.b16 %v336
        %v381 = vunpack.c.l.b16 %v337
        %v382 = vunpack.c.l.b16 %v338
        %v383 = vunpack.c.l.b16 %v339
        %v384 = vunpack.c.l.b16 %v340
        %v385 = vunpack.c.l.b16 %v341
        %v386 = vunpack.c.l.b16 %v342
        %v387 = vunpack.c.l.b16 %v343
        %v388 = vpack.c.b16 %v373, %v372
        %v389 = vpack.c.b16 %v375, %v374
        %v390 = vpack.c.b16 %v377, %v376
        %v391 = vpack.c.b16 %v379, %v378
        %v392 = vpack.c.b16 %v381, %v380
        %v393 = vpack.c.b16 %v383, %v382
        %v394 = vpack.c.b16 %v385, %v384
        %v395 = vpack.c.b16 %v387, %v386
        %v404 = vunpack.c.l.b16 %v344
        %v405 = vunpack.c.l.b16 %v345
        %v406 = vunpack.c.l.b16 %v346
        %v407 = vunpack.c.l.b16 %v347
        %v408 = vunpack.c.l.b16 %v348
        %v409 = vunpack.c.l.b16 %v349
        %v410 = vunpack.c.l.b16 %v350
        %v411 = vunpack.c.l.b16 %v351
        %v412 = vpack.c.b16 %v405, %v404
        %v413 = vpack.c.b16 %v407, %v406
        %v414 = vpack.c.b16 %v409, %v408
        %v415 = vpack.c.b16 %v411, %v410
        %vm420 = vcmask 523264
        %v422 = vsel %vm420, %v388, 0
        %v425 = vsel %vm420, %v389, 0
        %v428 = vsel %vm420, %v390, 0
        %v431 = vsel %vm420, %v391, 0
        %v434 = vsel %vm420, %v392, 0
        %v437 = vsel %vm420, %v393, 0
        %v440 = vsel %vm420, %v394, 0
        %v443 = vsel %vm420, %v395, 0
        %445 = vmatpush.bf16.msra.mxu0 0
        %446 = vmatpush.bf16.msra.mxu0 0
        %447 = vmatpush.bf16.msra.mxu0 0
        %448 = vmatpush.bf16.msra.mxu0 0
        %449 = vmatpush.bf16.msra.mxu0 %v415
        %450 = vmatpush.bf16.msra.mxu0 %v414
        %451 = vmatpush.bf16.msra.mxu0 %v413
        %452 = vmatpush.bf16.msra.mxu0 %v412
        %453 = vmatmul.bf16.gmra.mxu0 %v422
        %v454 = vpop.f32.mrf.mxu0
        %v455 = vadd.f32 %v354, %v454
        %v456 = vpop.f32.mrf.mxu0
        %v457 = vadd.f32 %v354, %v456
        %458 = vmatmul.bf16.gmra.mxu0 %v425
        %v459 = vpop.f32.mrf.mxu0
        %v460 = vadd.f32 %v354, %v459
        %v461 = vpop.f32.mrf.mxu0
        %v462 = vadd.f32 %v354, %v461
        %463 = vmatmul.bf16.gmra.mxu0 %v428
        %v464 = vpop.f32.mrf.mxu0
        %v465 = vadd.f32 %v354, %v464
        %v466 = vpop.f32.mrf.mxu0
        %v467 = vadd.f32 %v354, %v466
        %468 = vmatmul.bf16.gmra.mxu0 %v431
        %v469 = vpop.f32.mrf.mxu0
        %v470 = vadd.f32 %v354, %v469
        %v471 = vpop.f32.mrf.mxu0
        %v472 = vadd.f32 %v354, %v471
        %473 = vmatmul.bf16.gmra.mxu0 %v434
        %v474 = vpop.f32.mrf.mxu0
        %v475 = vadd.f32 %v354, %v474
        %v476 = vpop.f32.mrf.mxu0
        %v477 = vadd.f32 %v354, %v476
        %478 = vmatmul.bf16.gmra.mxu0 %v437
        %v479 = vpop.f32.mrf.mxu0
        %v480 = vadd.f32 %v354, %v479
        %v481 = vpop.f32.mrf.mxu0
        %v482 = vadd.f32 %v354, %v481
        %483 = vmatmul.bf16.gmra.mxu0 %v440
        %v484 = vpop.f32.mrf.mxu0
        %v485 = vadd.f32 %v354, %v484
        %v486 = vpop.f32.mrf.mxu0
        %v487 = vadd.f32 %v354, %v486
        %488 = vmatmul.bf16.gmra.mxu0 %v443
        %v489 = vpop.f32.mrf.mxu0
        %v490 = vadd.f32 %v354, %v489
        %v491 = vpop.f32.mrf.mxu0
        %v492 = vadd.f32 %v354, %v491
        %493 = vdwg.mxu0
        %v494 = vmax.f32 %v455, 0.0
        %v495 = vmax.f32 %v457, 0.0
        %v496 = vmax.f32 %v460, 0.0
        %v497 = vmax.f32 %v462, 0.0
        %v498 = vmax.f32 %v465, 0.0
        %v499 = vmax.f32 %v467, 0.0
        %v500 = vmax.f32 %v470, 0.0
        %v501 = vmax.f32 %v472, 0.0
        %v502 = vmax.f32 %v475, 0.0
        %v503 = vmax.f32 %v477, 0.0
        %v504 = vmax.f32 %v480, 0.0
        %v505 = vmax.f32 %v482, 0.0
        %v506 = vmax.f32 %v485, 0.0
        %v507 = vmax.f32 %v487, 0.0
        %v508 = vmax.f32 %v490, 0.0
        %v509 = vmax.f32 %v492, 0.0
        %v510 = vpack.c.bf16 %v495, %v494
        %v511 = vpack.c.bf16 %v497, %v496
        %v512 = vpack.c.bf16 %v499, %v498
        %v513 = vpack.c.bf16 %v501, %v500
        %v514 = vpack.c.bf16 %v503, %v502
        %v515 = vpack.c.bf16 %v505, %v504
        %v516 = vpack.c.bf16 %v507, %v506
        %v517 = vpack.c.bf16 %v509, %v508
        %v518 = vld [vmem:[%s3] sm:$0xf]
        %v519 = vld [vmem:[%s3 + $0x4] sm:$0xf]
        %v520 = vld [vmem:[%s3 + $0x8] sm:$0xf]
        %v521 = vld [vmem:[%s3 + $0xc] sm:$0xf]
        %v522 = vld [vmem:[%s3 + $0x10] sm:$0xf]
        %v523 = vld [vmem:[%s3 + $0x14] sm:$0xf]
        %v524 = vld [vmem:[%s3 + $0x18] sm:$0xf]
        %v525 = vld [vmem:[%s3 + $0x1c] sm:$0xf]
        %v526 = vld [vmem:[%s4] sm:$0x1]
        %v528 = vperm.slane %v526, 0
        %v538 = vunpack.c.l.b16 %v518
        %v539 = vunpack.c.l.b16 %v519
        %v540 = vunpack.c.l.b16 %v520
        %v541 = vunpack.c.l.b16 %v521
        %v542 = vunpack.c.l.b16 %v522
        %v543 = vunpack.c.l.b16 %v523
        %v544 = vunpack.c.l.b16 %v524
        %v545 = vunpack.c.l.b16 %v525
        %v546 = vpack.c.b16 %v539, %v538
        %v547 = vpack.c.b16 %v541, %v540
        %v548 = vpack.c.b16 %v543, %v542
        %v549 = vpack.c.b16 %v545, %v544
        %v555 = vsel %vm420, %v510, 0
        %v558 = vsel %vm420, %v511, 0
        %v561 = vsel %vm420, %v512, 0
        %v564 = vsel %vm420, %v513, 0
        %v567 = vsel %vm420, %v514, 0
        %v570 = vsel %vm420, %v515, 0
        %v573 = vsel %vm420, %v516, 0
        %v576 = vsel %vm420, %v517, 0
        %578 = vmatpush.bf16.msra.mxu0 0
        %579 = vmatpush.bf16.msra.mxu0 0
        %580 = vmatpush.bf16.msra.mxu0 0
        %581 = vmatpush.bf16.msra.mxu0 0
        %582 = vmatpush.bf16.msra.mxu0 %v549
        %583 = vmatpush.bf16.msra.mxu0 %v548
        %584 = vmatpush.bf16.msra.mxu0 %v547
        %585 = vmatpush.bf16.msra.mxu0 %v546
        %586 = vmatmul.bf16.gmra.mxu0 %v555
        %v587 = vpop.f32.mrf.mxu0
        %v588 = vadd.f32 %v528, %v587
        %v589 = vpop.f32.mrf.mxu0
        %v590 = vadd.f32 %v528, %v589
        %591 = vmatmul.bf16.gmra.mxu0 %v558
        %v592 = vpop.f32.mrf.mxu0
        %v593 = vadd.f32 %v528, %v592
        %v594 = vpop.f32.mrf.mxu0
        %v595 = vadd.f32 %v528, %v594
        %596 = vmatmul.bf16.gmra.mxu0 %v561
        %v597 = vpop.f32.mrf.mxu0
        %v598 = vadd.f32 %v528, %v597
        %v599 = vpop.f32.mrf.mxu0
        %v600 = vadd.f32 %v528, %v599
        %601 = vmatmul.bf16.gmra.mxu0 %v564
        %v602 = vpop.f32.mrf.mxu0
        %v603 = vadd.f32 %v528, %v602
        %v604 = vpop.f32.mrf.mxu0
        %v605 = vadd.f32 %v528, %v604
        %606 = vmatmul.bf16.gmra.mxu0 %v567
        %v607 = vpop.f32.mrf.mxu0
        %v608 = vadd.f32 %v528, %v607
        %v609 = vpop.f32.mrf.mxu0
        %v610 = vadd.f32 %v528, %v609
        %611 = vmatmul.bf16.gmra.mxu0 %v570
        %v612 = vpop.f32.mrf.mxu0
        %v613 = vadd.f32 %v528, %v612
        %v614 = vpop.f32.mrf.mxu0
        %v615 = vadd.f32 %v528, %v614
        %616 = vmatmul.bf16.gmra.mxu0 %v573
        %v617 = vpop.f32.mrf.mxu0
        %v618 = vadd.f32 %v528, %v617
        %v619 = vpop.f32.mrf.mxu0
        %v620 = vadd.f32 %v528, %v619
        %621 = vmatmul.bf16.gmra.mxu0 %v576
        %v622 = vpop.f32.mrf.mxu0
        %v623 = vadd.f32 %v528, %v622
        %v624 = vpop.f32.mrf.mxu0
        %v625 = vadd.f32 %v528, %v624
        %626 = vdwg.mxu0
        %v627 = vmax.f32 %v588, 0.0
        %v628 = vmax.f32 %v590, 0.0
        %v629 = vmax.f32 %v593, 0.0
        %v630 = vmax.f32 %v595, 0.0
        %v631 = vmax.f32 %v598, 0.0
        %v632 = vmax.f32 %v600, 0.0
        %v633 = vmax.f32 %v603, 0.0
        %v634 = vmax.f32 %v605, 0.0
        %v635 = vmax.f32 %v608, 0.0
        %v636 = vmax.f32 %v610, 0.0
        %v637 = vmax.f32 %v613, 0.0
        %v638 = vmax.f32 %v615, 0.0
        %v639 = vmax.f32 %v618, 0.0
        %v640 = vmax.f32 %v620, 0.0
        %v641 = vmax.f32 %v623, 0.0
        %v642 = vmax.f32 %v625, 0.0
        %v643 = vpack.c.bf16 %v628, %v627
        %v644 = vpack.c.bf16 %v630, %v629
        %v645 = vpack.c.bf16 %v632, %v631
        %v646 = vpack.c.bf16 %v634, %v633
        %v647 = vpack.c.bf16 %v636, %v635
        %v648 = vpack.c.bf16 %v638, %v637
        %v649 = vpack.c.bf16 %v640, %v639
        %v650 = vpack.c.bf16 %v642, %v641
        %v651 = vld [vmem:[#allocation2] sm:$0xff]
        %v652 = vld [vmem:[#allocation2 + $0x8] sm:$0xff]
        %v653 = vld [vmem:[#allocation2 + $0x10] sm:$0xff]
        %v654 = vld [vmem:[#allocation2 + $0x18] sm:$0xff]
        %v655 = vld [vmem:[#allocation2 + $0x20] sm:$0xff]
        %v656 = vld [vmem:[#allocation2 + $0x28] sm:$0xff]
        %v657 = vld [vmem:[#allocation2 + $0x30] sm:$0xff]
        %v658 = vld [vmem:[#allocation2 + $0x38] sm:$0xff]
        %v659 = vld [vmem:[#allocation2 + $0x40] sm:$0xff]
        %v660 = vld [vmem:[#allocation2 + $0x48] sm:$0xff]
        %v661 = vld [vmem:[#allocation2 + $0x50] sm:$0xff]
        %v662 = vld [vmem:[#allocation2 + $0x58] sm:$0xff]
        %v663 = vld [vmem:[#allocation2 + $0x60] sm:$0xff]
        %v664 = vld [vmem:[#allocation2 + $0x68] sm:$0xff]
        %v665 = vld [vmem:[#allocation2 + $0x70] sm:$0xff]
        %v666 = vld [vmem:[#allocation2 + $0x78] sm:$0xff]
        %v667 = vld [vmem:[#allocation2 + $0x80] sm:$0xff]
        %v668 = vld [vmem:[#allocation2 + $0x88] sm:$0xff]
        %v669 = vld [vmem:[#allocation2 + $0x90] sm:$0xff]
        %v670 = vld [vmem:[#allocation2 + $0x98] sm:$0xff]
        %v671 = vld [vmem:[#allocation2 + $0xa0] sm:$0xff]
        %v672 = vld [vmem:[#allocation2 + $0xa8] sm:$0xff]
        %v673 = vld [vmem:[#allocation2 + $0xb0] sm:$0xff]
        %v674 = vld [vmem:[#allocation2 + $0xb8] sm:$0xff]
        %v675 = vld [vmem:[#allocation2 + $0xc0] sm:$0xff]
        %v676 = vld [vmem:[#allocation2 + $0xc8] sm:$0xff]
        %v677 = vld [vmem:[#allocation2 + $0xd0] sm:$0xff]
        %v678 = vld [vmem:[#allocation2 + $0xd8] sm:$0xff]
        %v679 = vld [vmem:[#allocation2 + $0xe0] sm:$0xff]
        %v680 = vld [vmem:[#allocation2 + $0xe8] sm:$0xff]
        %v681 = vld [vmem:[#allocation2 + $0xf0] sm:$0xff]
        %v682 = vld [vmem:[#allocation2 + $0xf8] sm:$0xff]
        %v683 = vld [vmem:[#allocation2 + $0x100] sm:$0xff]
        %v684 = vld [vmem:[#allocation2 + $0x108] sm:$0xff]
        %v685 = vld [vmem:[#allocation2 + $0x110] sm:$0xff]
        %v686 = vld [vmem:[#allocation2 + $0x118] sm:$0xff]
        %v687 = vld [vmem:[#allocation2 + $0x120] sm:$0xff]
        %v688 = vld [vmem:[#allocation2 + $0x128] sm:$0xff]
        %v689 = vld [vmem:[#allocation2 + $0x130] sm:$0xff]
        %v690 = vld [vmem:[#allocation2 + $0x138] sm:$0xff]
        %v691 = vld [vmem:[#allocation2 + $0x140] sm:$0xff]
        %v692 = vld [vmem:[#allocation2 + $0x148] sm:$0xff]
        %v693 = vld [vmem:[#allocation2 + $0x150] sm:$0xff]
        %v694 = vld [vmem:[#allocation2 + $0x158] sm:$0xff]
        %v695 = vld [vmem:[#allocation2 + $0x160] sm:$0xff]
        %v696 = vld [vmem:[#allocation2 + $0x168] sm:$0xff]
        %v697 = vld [vmem:[#allocation2 + $0x170] sm:$0xff]
        %v698 = vld [vmem:[#allocation2 + $0x178] sm:$0xff]
        %v699 = vld [vmem:[#allocation2 + $0x180] sm:$0xff]
        %v700 = vld [vmem:[#allocation2 + $0x188] sm:$0xff]
        %v701 = vld [vmem:[#allocation2 + $0x190] sm:$0xff]
        %v702 = vld [vmem:[#allocation2 + $0x198] sm:$0xff]
        %v703 = vld [vmem:[#allocation2 + $0x1a0] sm:$0xff]
        %v704 = vld [vmem:[#allocation2 + $0x1a8] sm:$0xff]
        %v705 = vld [vmem:[#allocation2 + $0x1b0] sm:$0xff]
        %v706 = vld [vmem:[#allocation2 + $0x1b8] sm:$0xff]
        %v707 = vld [vmem:[#allocation2 + $0x1c0] sm:$0xff]
        %v708 = vld [vmem:[#allocation2 + $0x1c8] sm:$0xff]
        %v709 = vld [vmem:[#allocation2 + $0x1d0] sm:$0xff]
        %v710 = vld [vmem:[#allocation2 + $0x1d8] sm:$0xff]
        %v711 = vld [vmem:[#allocation2 + $0x1e0] sm:$0xff]
        %v712 = vld [vmem:[#allocation2 + $0x1e8] sm:$0xff]
        %v713 = vld [vmem:[#allocation2 + $0x1f0] sm:$0xff]
        %v714 = vld [vmem:[#allocation2 + $0x1f8] sm:$0xff]
        %v715 = vld [vmem:[%s6] sm:$0xff]
        %v717 = vperm.slane %v715, 0
        %v718 = vperm.slane %v715, 1
        %v719 = vperm.slane %v715, 2
        %v720 = vperm.slane %v715, 3
        %v721 = vperm.slane %v715, 4
        %v722 = vperm.slane %v715, 5
        %v723 = vperm.slane %v715, 6
        %v724 = vperm.slane %v715, 7
        %v797 = vunpack.c.l.b16 %v651
        %v798 = vunpack.c.h.b16 %v651
        %v799 = vunpack.c.l.b16 %v652
        %v800 = vunpack.c.h.b16 %v652
        %v801 = vunpack.c.l.b16 %v653
        %v802 = vunpack.c.h.b16 %v653
        %v803 = vunpack.c.l.b16 %v654
        %v804 = vunpack.c.h.b16 %v654
        %v805 = vunpack.c.l.b16 %v655
        %v806 = vunpack.c.h.b16 %v655
        %v807 = vunpack.c.l.b16 %v656
        %v808 = vunpack.c.h.b16 %v656
        %v809 = vunpack.c.l.b16 %v657
        %v810 = vunpack.c.h.b16 %v657
        %v811 = vunpack.c.l.b16 %v658
        %v812 = vunpack.c.h.b16 %v658
        %v813 = vunpack.c.l.b16 %v659
        %v814 = vunpack.c.h.b16 %v659
        %v815 = vunpack.c.l.b16 %v660
        %v816 = vunpack.c.h.b16 %v660
        %v817 = vunpack.c.l.b16 %v661
        %v818 = vunpack.c.h.b16 %v661
        %v819 = vunpack.c.l.b16 %v662
        %v820 = vunpack.c.h.b16 %v662
        %v821 = vunpack.c.l.b16 %v663
        %v822 = vunpack.c.h.b16 %v663
        %v823 = vunpack.c.l.b16 %v664
        %v824 = vunpack.c.h.b16 %v664
        %v825 = vunpack.c.l.b16 %v665
        %v826 = vunpack.c.h.b16 %v665
        %v827 = vunpack.c.l.b16 %v666
        %v828 = vunpack.c.h.b16 %v666
        %v829 = vunpack.c.l.b16 %v667
        %v830 = vunpack.c.h.b16 %v667
        %v831 = vunpack.c.l.b16 %v668
        %v832 = vunpack.c.h.b16 %v668
        %v833 = vunpack.c.l.b16 %v669
        %v834 = vunpack.c.h.b16 %v669
        %v835 = vunpack.c.l.b16 %v670
        %v836 = vunpack.c.h.b16 %v670
        %v837 = vunpack.c.l.b16 %v671
        %v838 = vunpack.c.h.b16 %v671
        %v839 = vunpack.c.l.b16 %v672
        %v840 = vunpack.c.h.b16 %v672
        %v841 = vunpack.c.l.b16 %v673
        %v842 = vunpack.c.h.b16 %v673
        %v843 = vunpack.c.l.b16 %v674
        %v844 = vunpack.c.h.b16 %v674
        %v845 = vunpack.c.l.b16 %v675
        %v846 = vunpack.c.h.b16 %v675
        %v847 = vunpack.c.l.b16 %v676
        %v848 = vunpack.c.h.b16 %v676
        %v849 = vunpack.c.l.b16 %v677
        %v850 = vunpack.c.h.b16 %v677
        %v851 = vunpack.c.l.b16 %v678
        %v852 = vunpack.c.h.b16 %v678
        %v853 = vunpack.c.l.b16 %v679
        %v854 = vunpack.c.h.b16 %v679
        %v855 = vunpack.c.l.b16 %v680
        %v856 = vunpack.c.h.b16 %v680
        %v857 = vunpack.c.l.b16 %v681
        %v858 = vunpack.c.h.b16 %v681
        %v859 = vunpack.c.l.b16 %v682
        %v860 = vunpack.c.h.b16 %v682
        %v861 = vunpack.c.l.b16 %v683
        %v862 = vunpack.c.h.b16 %v683
        %v863 = vunpack.c.l.b16 %v684
        %v864 = vunpack.c.h.b16 %v684
        %v865 = vunpack.c.l.b16 %v685
        %v866 = vunpack.c.h.b16 %v685
        %v867 = vunpack.c.l.b16 %v686
        %v868 = vunpack.c.h.b16 %v686
        %v869 = vunpack.c.l.b16 %v687
        %v870 = vunpack.c.h.b16 %v687
        %v871 = vunpack.c.l.b16 %v688
        %v872 = vunpack.c.h.b16 %v688
        %v873 = vunpack.c.l.b16 %v689
        %v874 = vunpack.c.h.b16 %v689
        %v875 = vunpack.c.l.b16 %v690
        %v876 = vunpack.c.h.b16 %v690
        %v877 = vunpack.c.l.b16 %v691
        %v878 = vunpack.c.h.b16 %v691
        %v879 = vunpack.c.l.b16 %v692
        %v880 = vunpack.c.h.b16 %v692
        %v881 = vunpack.c.l.b16 %v693
        %v882 = vunpack.c.h.b16 %v693
        %v883 = vunpack.c.l.b16 %v694
        %v884 = vunpack.c.h.b16 %v694
        %v885 = vunpack.c.l.b16 %v695
        %v886 = vunpack.c.h.b16 %v695
        %v887 = vunpack.c.l.b16 %v696
        %v888 = vunpack.c.h.b16 %v696
        %v889 = vunpack.c.l.b16 %v697
        %v890 = vunpack.c.h.b16 %v697
        %v891 = vunpack.c.l.b16 %v698
        %v892 = vunpack.c.h.b16 %v698
        %v893 = vunpack.c.l.b16 %v699
        %v894 = vunpack.c.h.b16 %v699
        %v895 = vunpack.c.l.b16 %v700
        %v896 = vunpack.c.h.b16 %v700
        %v897 = vunpack.c.l.b16 %v701
        %v898 = vunpack.c.h.b16 %v701
        %v899 = vunpack.c.l.b16 %v702
        %v900 = vunpack.c.h.b16 %v702
        %v901 = vunpack.c.l.b16 %v703
        %v902 = vunpack.c.h.b16 %v703
        %v903 = vunpack.c.l.b16 %v704
        %v904 = vunpack.c.h.b16 %v704
        %v905 = vunpack.c.l.b16 %v705
        %v906 = vunpack.c.h.b16 %v705
        %v907 = vunpack.c.l.b16 %v706
        %v908 = vunpack.c.h.b16 %v706
        %v909 = vunpack.c.l.b16 %v707
        %v910 = vunpack.c.h.b16 %v707
        %v911 = vunpack.c.l.b16 %v708
        %v912 = vunpack.c.h.b16 %v708
        %v913 = vunpack.c.l.b16 %v709
        %v914 = vunpack.c.h.b16 %v709
        %v915 = vunpack.c.l.b16 %v710
        %v916 = vunpack.c.h.b16 %v710
        %v917 = vunpack.c.l.b16 %v711
        %v918 = vunpack.c.h.b16 %v711
        %v919 = vunpack.c.l.b16 %v712
        %v920 = vunpack.c.h.b16 %v712
        %v921 = vunpack.c.l.b16 %v713
        %v922 = vunpack.c.h.b16 %v713
        %v923 = vunpack.c.l.b16 %v714
        %v924 = vunpack.c.h.b16 %v714
        %v925 = vpack.c.b16 %v805, %v797
        %v926 = vpack.c.b16 %v806, %v798
        %v927 = vpack.c.b16 %v807, %v799
        %v928 = vpack.c.b16 %v808, %v800
        %v929 = vpack.c.b16 %v809, %v801
        %v930 = vpack.c.b16 %v810, %v802
        %v931 = vpack.c.b16 %v811, %v803
        %v932 = vpack.c.b16 %v812, %v804
        %v933 = vpack.c.b16 %v821, %v813
        %v934 = vpack.c.b16 %v822, %v814
        %v935 = vpack.c.b16 %v823, %v815
        %v936 = vpack.c.b16 %v824, %v816
        %v937 = vpack.c.b16 %v825, %v817
        %v938 = vpack.c.b16 %v826, %v818
        %v939 = vpack.c.b16 %v827, %v819
        %v940 = vpack.c.b16 %v828, %v820
        %v941 = vpack.c.b16 %v837, %v829
        %v942 = vpack.c.b16 %v838, %v830
        %v943 = vpack.c.b16 %v839, %v831
        %v944 = vpack.c.b16 %v840, %v832
        %v945 = vpack.c.b16 %v841, %v833
        %v946 = vpack.c.b16 %v842, %v834
        %v947 = vpack.c.b16 %v843, %v835
        %v948 = vpack.c.b16 %v844, %v836
        %v949 = vpack.c.b16 %v853, %v845
        %v950 = vpack.c.b16 %v854, %v846
        %v951 = vpack.c.b16 %v855, %v847
        %v952 = vpack.c.b16 %v856, %v848
        %v953 = vpack.c.b16 %v857, %v849
        %v954 = vpack.c.b16 %v858, %v850
        %v955 = vpack.c.b16 %v859, %v851
        %v956 = vpack.c.b16 %v860, %v852
        %v957 = vpack.c.b16 %v869, %v861
        %v958 = vpack.c.b16 %v870, %v862
        %v959 = vpack.c.b16 %v871, %v863
        %v960 = vpack.c.b16 %v872, %v864
        %v961 = vpack.c.b16 %v873, %v865
        %v962 = vpack.c.b16 %v874, %v866
        %v963 = vpack.c.b16 %v875, %v867
        %v964 = vpack.c.b16 %v876, %v868
        %v965 = vpack.c.b16 %v885, %v877
        %v966 = vpack.c.b16 %v886, %v878
        %v967 = vpack.c.b16 %v887, %v879
        %v968 = vpack.c.b16 %v888, %v880
        %v969 = vpack.c.b16 %v889, %v881
        %v970 = vpack.c.b16 %v890, %v882
        %v971 = vpack.c.b16 %v891, %v883
        %v972 = vpack.c.b16 %v892, %v884
        %v973 = vpack.c.b16 %v901, %v893
        %v974 = vpack.c.b16 %v902, %v894
        %v975 = vpack.c.b16 %v903, %v895
        %v976 = vpack.c.b16 %v904, %v896
        %v977 = vpack.c.b16 %v905, %v897
        %v978 = vpack.c.b16 %v906, %v898
        %v979 = vpack.c.b16 %v907, %v899
        %v980 = vpack.c.b16 %v908, %v900
        %v981 = vpack.c.b16 %v917, %v909
        %v982 = vpack.c.b16 %v918, %v910
        %v983 = vpack.c.b16 %v919, %v911
        %v984 = vpack.c.b16 %v920, %v912
        %v985 = vpack.c.b16 %v921, %v913
        %v986 = vpack.c.b16 %v922, %v914
        %v987 = vpack.c.b16 %v923, %v915
        %v988 = vpack.c.b16 %v924, %v916
        %1053 = vmatpush.bf16.msra.mxu0 %v981
        %1054 = vmatpush.bf16.msra.mxu0 %v973
        %1055 = vmatpush.bf16.msra.mxu0 %v965
        %1056 = vmatpush.bf16.msra.mxu0 %v957
        %1057 = vmatpush.bf16.msra.mxu0 %v949
        %1058 = vmatpush.bf16.msra.mxu0 %v941
        %1059 = vmatpush.bf16.msra.mxu0 %v933
        %1060 = vmatpush.bf16.msra.mxu0 %v925
        %1061 = vmatmul.bf16.gmra.mxu0 %v643
        %v1062 = vpop.f32.mrf.mxu0
        %v1063 = vadd.f32 %v717, %v1062
        %v1064 = vpop.f32.mrf.mxu0
        %v1065 = vadd.f32 %v717, %v1064
        %1066 = vmatmul.bf16.gmra.mxu0 %v644
        %v1067 = vpop.f32.mrf.mxu0
        %v1068 = vadd.f32 %v717, %v1067
        %v1069 = vpop.f32.mrf.mxu0
        %v1070 = vadd.f32 %v717, %v1069
        %1071 = vmatmul.bf16.gmra.mxu0 %v645
        %v1072 = vpop.f32.mrf.mxu0
        %v1073 = vadd.f32 %v717, %v1072
        %v1074 = vpop.f32.mrf.mxu0
        %v1075 = vadd.f32 %v717, %v1074
        %1076 = vmatmul.bf16.gmra.mxu0 %v646
        %v1077 = vpop.f32.mrf.mxu0
        %v1078 = vadd.f32 %v717, %v1077
        %v1079 = vpop.f32.mrf.mxu0
        %v1080 = vadd.f32 %v717, %v1079
        %1081 = vmatmul.bf16.gmra.mxu0 %v647
        %v1082 = vpop.f32.mrf.mxu0
        %v1083 = vadd.f32 %v717, %v1082
        %v1084 = vpop.f32.mrf.mxu0
        %v1085 = vadd.f32 %v717, %v1084
        %1086 = vmatmul.bf16.gmra.mxu0 %v648
        %v1087 = vpop.f32.mrf.mxu0
        %v1088 = vadd.f32 %v717, %v1087
        %v1089 = vpop.f32.mrf.mxu0
        %v1090 = vadd.f32 %v717, %v1089
        %1091 = vmatmul.bf16.gmra.mxu0 %v649
        %v1092 = vpop.f32.mrf.mxu0
        %v1093 = vadd.f32 %v717, %v1092
        %v1094 = vpop.f32.mrf.mxu0
        %v1095 = vadd.f32 %v717, %v1094
        %1096 = vmatmul.bf16.gmra.mxu0 %v650
        %v1097 = vpop.f32.mrf.mxu0
        %v1098 = vadd.f32 %v717, %v1097
        %v1099 = vpop.f32.mrf.mxu0
        %v1100 = vadd.f32 %v717, %v1099
        %1101 = vdwg.mxu0
        %1102 = vmatpush.bf16.msra.mxu0 %v982
        %1103 = vmatpush.bf16.msra.mxu0 %v974
        %1104 = vmatpush.bf16.msra.mxu0 %v966
        %1105 = vmatpush.bf16.msra.mxu0 %v958
        %1106 = vmatpush.bf16.msra.mxu0 %v950
        %1107 = vmatpush.bf16.msra.mxu0 %v942
        %1108 = vmatpush.bf16.msra.mxu0 %v934
        %1109 = vmatpush.bf16.msra.mxu0 %v926
        %1110 = vmatmul.bf16.gmra.mxu0 %v643
        %v1111 = vpop.f32.mrf.mxu0
        %v1112 = vadd.f32 %v718, %v1111
        %v1113 = vpop.f32.mrf.mxu0
        %v1114 = vadd.f32 %v718, %v1113
        %1115 = vmatmul.bf16.gmra.mxu0 %v644
        %v1116 = vpop.f32.mrf.mxu0
        %v1117 = vadd.f32 %v718, %v1116
        %v1118 = vpop.f32.mrf.mxu0
        %v1119 = vadd.f32 %v718, %v1118
        %1120 = vmatmul.bf16.gmra.mxu0 %v645
        %v1121 = vpop.f32.mrf.mxu0
        %v1122 = vadd.f32 %v718, %v1121
        %v1123 = vpop.f32.mrf.mxu0
        %v1124 = vadd.f32 %v718, %v1123
        %1125 = vmatmul.bf16.gmra.mxu0 %v646
        %v1126 = vpop.f32.mrf.mxu0
        %v1127 = vadd.f32 %v718, %v1126
        %v1128 = vpop.f32.mrf.mxu0
        %v1129 = vadd.f32 %v718, %v1128
        %1130 = vmatmul.bf16.gmra.mxu0 %v647
        %v1131 = vpop.f32.mrf.mxu0
        %v1132 = vadd.f32 %v718, %v1131
        %v1133 = vpop.f32.mrf.mxu0
        %v1134 = vadd.f32 %v718, %v1133
        %1135 = vmatmul.bf16.gmra.mxu0 %v648
        %v1136 = vpop.f32.mrf.mxu0
        %v1137 = vadd.f32 %v718, %v1136
        %v1138 = vpop.f32.mrf.mxu0
        %v1139 = vadd.f32 %v718, %v1138
        %1140 = vmatmul.bf16.gmra.mxu0 %v649
        %v1141 = vpop.f32.mrf.mxu0
        %v1142 = vadd.f32 %v718, %v1141
        %v1143 = vpop.f32.mrf.mxu0
        %v1144 = vadd.f32 %v718, %v1143
        %1145 = vmatmul.bf16.gmra.mxu0 %v650
        %v1146 = vpop.f32.mrf.mxu0
        %v1147 = vadd.f32 %v718, %v1146
        %v1148 = vpop.f32.mrf.mxu0
        %v1149 = vadd.f32 %v718, %v1148
        %1150 = vdwg.mxu0
        %1151 = vmatpush.bf16.msra.mxu0 %v983
        %1152 = vmatpush.bf16.msra.mxu0 %v975
        %1153 = vmatpush.bf16.msra.mxu0 %v967
        %1154 = vmatpush.bf16.msra.mxu0 %v959
        %1155 = vmatpush.bf16.msra.mxu0 %v951
        %1156 = vmatpush.bf16.msra.mxu0 %v943
        %1157 = vmatpush.bf16.msra.mxu0 %v935
        %1158 = vmatpush.bf16.msra.mxu0 %v927
        %1159 = vmatmul.bf16.gmra.mxu0 %v643
        %v1160 = vpop.f32.mrf.mxu0
        %v1161 = vadd.f32 %v719, %v1160
        %v1162 = vpop.f32.mrf.mxu0
        %v1163 = vadd.f32 %v719, %v1162
        %1164 = vmatmul.bf16.gmra.mxu0 %v644
        %v1165 = vpop.f32.mrf.mxu0
        %v1166 = vadd.f32 %v719, %v1165
        %v1167 = vpop.f32.mrf.mxu0
        %v1168 = vadd.f32 %v719, %v1167
        %1169 = vmatmul.bf16.gmra.mxu0 %v645
        %v1170 = vpop.f32.mrf.mxu0
        %v1171 = vadd.f32 %v719, %v1170
        %v1172 = vpop.f32.mrf.mxu0
        %v1173 = vadd.f32 %v719, %v1172
        %1174 = vmatmul.bf16.gmra.mxu0 %v646
        %v1175 = vpop.f32.mrf.mxu0
        %v1176 = vadd.f32 %v719, %v1175
        %v1177 = vpop.f32.mrf.mxu0
        %v1178 = vadd.f32 %v719, %v1177
        %1179 = vmatmul.bf16.gmra.mxu0 %v647
        %v1180 = vpop.f32.mrf.mxu0
        %v1181 = vadd.f32 %v719, %v1180
        %v1182 = vpop.f32.mrf.mxu0
        %v1183 = vadd.f32 %v719, %v1182
        %1184 = vmatmul.bf16.gmra.mxu0 %v648
        %v1185 = vpop.f32.mrf.mxu0
        %v1186 = vadd.f32 %v719, %v1185
        %v1187 = vpop.f32.mrf.mxu0
        %v1188 = vadd.f32 %v719, %v1187
        %1189 = vmatmul.bf16.gmra.mxu0 %v649
        %v1190 = vpop.f32.mrf.mxu0
        %v1191 = vadd.f32 %v719, %v1190
        %v1192 = vpop.f32.mrf.mxu0
        %v1193 = vadd.f32 %v719, %v1192
        %1194 = vmatmul.bf16.gmra.mxu0 %v650
        %v1195 = vpop.f32.mrf.mxu0
        %v1196 = vadd.f32 %v719, %v1195
        %v1197 = vpop.f32.mrf.mxu0
        %v1198 = vadd.f32 %v719, %v1197
        %1199 = vdwg.mxu0
        %1200 = vmatpush.bf16.msra.mxu0 %v984
        %1201 = vmatpush.bf16.msra.mxu0 %v976
        %1202 = vmatpush.bf16.msra.mxu0 %v968
        %1203 = vmatpush.bf16.msra.mxu0 %v960
        %1204 = vmatpush.bf16.msra.mxu0 %v952
        %1205 = vmatpush.bf16.msra.mxu0 %v944
        %1206 = vmatpush.bf16.msra.mxu0 %v936
        %1207 = vmatpush.bf16.msra.mxu0 %v928
        %1208 = vmatmul.bf16.gmra.mxu0 %v643
        %v1209 = vpop.f32.mrf.mxu0
        %v1210 = vadd.f32 %v720, %v1209
        %v1211 = vpop.f32.mrf.mxu0
        %v1212 = vadd.f32 %v720, %v1211
        %1213 = vmatmul.bf16.gmra.mxu0 %v644
        %v1214 = vpop.f32.mrf.mxu0
        %v1215 = vadd.f32 %v720, %v1214
        %v1216 = vpop.f32.mrf.mxu0
        %v1217 = vadd.f32 %v720, %v1216
        %1218 = vmatmul.bf16.gmra.mxu0 %v645
        %v1219 = vpop.f32.mrf.mxu0
        %v1220 = vadd.f32 %v720, %v1219
        %v1221 = vpop.f32.mrf.mxu0
        %v1222 = vadd.f32 %v720, %v1221
        %1223 = vmatmul.bf16.gmra.mxu0 %v646
        %v1224 = vpop.f32.mrf.mxu0
        %v1225 = vadd.f32 %v720, %v1224
        %v1226 = vpop.f32.mrf.mxu0
        %v1227 = vadd.f32 %v720, %v1226
        %1228 = vmatmul.bf16.gmra.mxu0 %v647
        %v1229 = vpop.f32.mrf.mxu0
        %v1230 = vadd.f32 %v720, %v1229
        %v1231 = vpop.f32.mrf.mxu0
        %v1232 = vadd.f32 %v720, %v1231
        %1233 = vmatmul.bf16.gmra.mxu0 %v648
        %v1234 = vpop.f32.mrf.mxu0
        %v1235 = vadd.f32 %v720, %v1234
        %v1236 = vpop.f32.mrf.mxu0
        %v1237 = vadd.f32 %v720, %v1236
        %1238 = vmatmul.bf16.gmra.mxu0 %v649
        %v1239 = vpop.f32.mrf.mxu0
        %v1240 = vadd.f32 %v720, %v1239
        %v1241 = vpop.f32.mrf.mxu0
        %v1242 = vadd.f32 %v720, %v1241
        %1243 = vmatmul.bf16.gmra.mxu0 %v650
        %v1244 = vpop.f32.mrf.mxu0
        %v1245 = vadd.f32 %v720, %v1244
        %v1246 = vpop.f32.mrf.mxu0
        %v1247 = vadd.f32 %v720, %v1246
        %1248 = vdwg.mxu0
        %1249 = vmatpush.bf16.msra.mxu0 %v985
        %1250 = vmatpush.bf16.msra.mxu0 %v977
        %1251 = vmatpush.bf16.msra.mxu0 %v969
        %1252 = vmatpush.bf16.msra.mxu0 %v961
        %1253 = vmatpush.bf16.msra.mxu0 %v953
        %1254 = vmatpush.bf16.msra.mxu0 %v945
        %1255 = vmatpush.bf16.msra.mxu0 %v937
        %1256 = vmatpush.bf16.msra.mxu0 %v929
        %1257 = vmatmul.bf16.gmra.mxu0 %v643
        %v1258 = vpop.f32.mrf.mxu0
        %v1259 = vadd.f32 %v721, %v1258
        %v1260 = vpop.f32.mrf.mxu0
        %v1261 = vadd.f32 %v721, %v1260
        %1262 = vmatmul.bf16.gmra.mxu0 %v644
        %v1263 = vpop.f32.mrf.mxu0
        %v1264 = vadd.f32 %v721, %v1263
        %v1265 = vpop.f32.mrf.mxu0
        %v1266 = vadd.f32 %v721, %v1265
        %1267 = vmatmul.bf16.gmra.mxu0 %v645
        %v1268 = vpop.f32.mrf.mxu0
        %v1269 = vadd.f32 %v721, %v1268
        %v1270 = vpop.f32.mrf.mxu0
        %v1271 = vadd.f32 %v721, %v1270
        %1272 = vmatmul.bf16.gmra.mxu0 %v646
        %v1273 = vpop.f32.mrf.mxu0
        %v1274 = vadd.f32 %v721, %v1273
        %v1275 = vpop.f32.mrf.mxu0
        %v1276 = vadd.f32 %v721, %v1275
        %1277 = vmatmul.bf16.gmra.mxu0 %v647
        %v1278 = vpop.f32.mrf.mxu0
        %v1279 = vadd.f32 %v721, %v1278
        %v1280 = vpop.f32.mrf.mxu0
        %v1281 = vadd.f32 %v721, %v1280
        %1282 = vmatmul.bf16.gmra.mxu0 %v648
        %v1283 = vpop.f32.mrf.mxu0
        %v1284 = vadd.f32 %v721, %v1283
        %v1285 = vpop.f32.mrf.mxu0
        %v1286 = vadd.f32 %v721, %v1285
        %1287 = vmatmul.bf16.gmra.mxu0 %v649
        %v1288 = vpop.f32.mrf.mxu0
        %v1289 = vadd.f32 %v721, %v1288
        %v1290 = vpop.f32.mrf.mxu0
        %v1291 = vadd.f32 %v721, %v1290
        %1292 = vmatmul.bf16.gmra.mxu0 %v650
        %v1293 = vpop.f32.mrf.mxu0
        %v1294 = vadd.f32 %v721, %v1293
        %v1295 = vpop.f32.mrf.mxu0
        %v1296 = vadd.f32 %v721, %v1295
        %1297 = vdwg.mxu0
        %1298 = vmatpush.bf16.msra.mxu0 %v986
        %1299 = vmatpush.bf16.msra.mxu0 %v978
        %1300 = vmatpush.bf16.msra.mxu0 %v970
        %1301 = vmatpush.bf16.msra.mxu0 %v962
        %1302 = vmatpush.bf16.msra.mxu0 %v954
        %1303 = vmatpush.bf16.msra.mxu0 %v946
        %1304 = vmatpush.bf16.msra.mxu0 %v938
        %1305 = vmatpush.bf16.msra.mxu0 %v930
        %1306 = vmatmul.bf16.gmra.mxu0 %v643
        %v1307 = vpop.f32.mrf.mxu0
        %v1308 = vadd.f32 %v722, %v1307
        %v1309 = vpop.f32.mrf.mxu0
        %v1310 = vadd.f32 %v722, %v1309
        %1311 = vmatmul.bf16.gmra.mxu0 %v644
        %v1312 = vpop.f32.mrf.mxu0
        %v1313 = vadd.f32 %v722, %v1312
        %v1314 = vpop.f32.mrf.mxu0
        %v1315 = vadd.f32 %v722, %v1314
        %1316 = vmatmul.bf16.gmra.mxu0 %v645
        %v1317 = vpop.f32.mrf.mxu0
        %v1318 = vadd.f32 %v722, %v1317
        %v1319 = vpop.f32.mrf.mxu0
        %v1320 = vadd.f32 %v722, %v1319
        %1321 = vmatmul.bf16.gmra.mxu0 %v646
        %v1322 = vpop.f32.mrf.mxu0
        %v1323 = vadd.f32 %v722, %v1322
        %v1324 = vpop.f32.mrf.mxu0
        %v1325 = vadd.f32 %v722, %v1324
        %1326 = vmatmul.bf16.gmra.mxu0 %v647
        %v1327 = vpop.f32.mrf.mxu0
        %v1328 = vadd.f32 %v722, %v1327
        %v1329 = vpop.f32.mrf.mxu0
        %v1330 = vadd.f32 %v722, %v1329
        %1331 = vmatmul.bf16.gmra.mxu0 %v648
        %v1332 = vpop.f32.mrf.mxu0
        %v1333 = vadd.f32 %v722, %v1332
        %v1334 = vpop.f32.mrf.mxu0
        %v1335 = vadd.f32 %v722, %v1334
        %1336 = vmatmul.bf16.gmra.mxu0 %v649
        %v1337 = vpop.f32.mrf.mxu0
        %v1338 = vadd.f32 %v722, %v1337
        %v1339 = vpop.f32.mrf.mxu0
        %v1340 = vadd.f32 %v722, %v1339
        %1341 = vmatmul.bf16.gmra.mxu0 %v650
        %v1342 = vpop.f32.mrf.mxu0
        %v1343 = vadd.f32 %v722, %v1342
        %v1344 = vpop.f32.mrf.mxu0
        %v1345 = vadd.f32 %v722, %v1344
        %1346 = vdwg.mxu0
        %1347 = vmatpush.bf16.msra.mxu0 %v987
        %1348 = vmatpush.bf16.msra.mxu0 %v979
        %1349 = vmatpush.bf16.msra.mxu0 %v971
        %1350 = vmatpush.bf16.msra.mxu0 %v963
        %1351 = vmatpush.bf16.msra.mxu0 %v955
        %1352 = vmatpush.bf16.msra.mxu0 %v947
        %1353 = vmatpush.bf16.msra.mxu0 %v939
        %1354 = vmatpush.bf16.msra.mxu0 %v931
        %1355 = vmatmul.bf16.gmra.mxu0 %v643
        %v1356 = vpop.f32.mrf.mxu0
        %v1357 = vadd.f32 %v723, %v1356
        %v1358 = vpop.f32.mrf.mxu0
        %v1359 = vadd.f32 %v723, %v1358
        %1360 = vmatmul.bf16.gmra.mxu0 %v644
        %v1361 = vpop.f32.mrf.mxu0
        %v1362 = vadd.f32 %v723, %v1361
        %v1363 = vpop.f32.mrf.mxu0
        %v1364 = vadd.f32 %v723, %v1363
        %1365 = vmatmul.bf16.gmra.mxu0 %v645
        %v1366 = vpop.f32.mrf.mxu0
        %v1367 = vadd.f32 %v723, %v1366
        %v1368 = vpop.f32.mrf.mxu0
        %v1369 = vadd.f32 %v723, %v1368
        %1370 = vmatmul.bf16.gmra.mxu0 %v646
        %v1371 = vpop.f32.mrf.mxu0
        %v1372 = vadd.f32 %v723, %v1371
        %v1373 = vpop.f32.mrf.mxu0
        %v1374 = vadd.f32 %v723, %v1373
        %1375 = vmatmul.bf16.gmra.mxu0 %v647
        %v1376 = vpop.f32.mrf.mxu0
        %v1377 = vadd.f32 %v723, %v1376
        %v1378 = vpop.f32.mrf.mxu0
        %v1379 = vadd.f32 %v723, %v1378
        %1380 = vmatmul.bf16.gmra.mxu0 %v648
        %v1381 = vpop.f32.mrf.mxu0
        %v1382 = vadd.f32 %v723, %v1381
        %v1383 = vpop.f32.mrf.mxu0
        %v1384 = vadd.f32 %v723, %v1383
        %1385 = vmatmul.bf16.gmra.mxu0 %v649
        %v1386 = vpop.f32.mrf.mxu0
        %v1387 = vadd.f32 %v723, %v1386
        %v1388 = vpop.f32.mrf.mxu0
        %v1389 = vadd.f32 %v723, %v1388
        %1390 = vmatmul.bf16.gmra.mxu0 %v650
        %v1391 = vpop.f32.mrf.mxu0
        %v1392 = vadd.f32 %v723, %v1391
        %v1393 = vpop.f32.mrf.mxu0
        %v1394 = vadd.f32 %v723, %v1393
        %1395 = vdwg.mxu0
        %1396 = vmatpush.bf16.msra.mxu0 %v988
        %1397 = vmatpush.bf16.msra.mxu0 %v980
        %1398 = vmatpush.bf16.msra.mxu0 %v972
        %1399 = vmatpush.bf16.msra.mxu0 %v964
        %1400 = vmatpush.bf16.msra.mxu0 %v956
        %1401 = vmatpush.bf16.msra.mxu0 %v948
        %1402 = vmatpush.bf16.msra.mxu0 %v940
        %1403 = vmatpush.bf16.msra.mxu0 %v932
        %1404 = vmatmul.bf16.gmra.mxu0 %v643
        %v1405 = vpop.f32.mrf.mxu0
        %v1406 = vadd.f32 %v724, %v1405
        %v1407 = vpop.f32.mrf.mxu0
        %v1408 = vadd.f32 %v724, %v1407
        %1409 = vmatmul.bf16.gmra.mxu0 %v644
        %v1410 = vpop.f32.mrf.mxu0
        %v1411 = vadd.f32 %v724, %v1410
        %v1412 = vpop.f32.mrf.mxu0
        %v1413 = vadd.f32 %v724, %v1412
        %1414 = vmatmul.bf16.gmra.mxu0 %v645
        %v1415 = vpop.f32.mrf.mxu0
        %v1416 = vadd.f32 %v724, %v1415
        %v1417 = vpop.f32.mrf.mxu0
        %v1418 = vadd.f32 %v724, %v1417
        %1419 = vmatmul.bf16.gmra.mxu0 %v646
        %v1420 = vpop.f32.mrf.mxu0
        %v1421 = vadd.f32 %v724, %v1420
        %v1422 = vpop.f32.mrf.mxu0
        %v1423 = vadd.f32 %v724, %v1422
        %1424 = vmatmul.bf16.gmra.mxu0 %v647
        %v1425 = vpop.f32.mrf.mxu0
        %v1426 = vadd.f32 %v724, %v1425
        %v1427 = vpop.f32.mrf.mxu0
        %v1428 = vadd.f32 %v724, %v1427
        %1429 = vmatmul.bf16.gmra.mxu0 %v648
        %v1430 = vpop.f32.mrf.mxu0
        %v1431 = vadd.f32 %v724, %v1430
        %v1432 = vpop.f32.mrf.mxu0
        %v1433 = vadd.f32 %v724, %v1432
        %1434 = vmatmul.bf16.gmra.mxu0 %v649
        %v1435 = vpop.f32.mrf.mxu0
        %v1436 = vadd.f32 %v724, %v1435
        %v1437 = vpop.f32.mrf.mxu0
        %v1438 = vadd.f32 %v724, %v1437
        %1439 = vmatmul.bf16.gmra.mxu0 %v650
        %v1440 = vpop.f32.mrf.mxu0
        %v1441 = vadd.f32 %v724, %v1440
        %v1442 = vpop.f32.mrf.mxu0
        %v1443 = vadd.f32 %v724, %v1442
        %1444 = vdwg.mxu0
        %v1445 = vmax.f32 %v1063, 0.0
        %v1446 = vmax.f32 %v1112, 0.0
        %v1447 = vmax.f32 %v1161, 0.0
        %v1448 = vmax.f32 %v1210, 0.0
        %v1449 = vmax.f32 %v1259, 0.0
        %v1450 = vmax.f32 %v1308, 0.0
        %v1451 = vmax.f32 %v1357, 0.0
        %v1452 = vmax.f32 %v1406, 0.0
        %v1453 = vmax.f32 %v1065, 0.0
        %v1454 = vmax.f32 %v1114, 0.0
        %v1455 = vmax.f32 %v1163, 0.0
        %v1456 = vmax.f32 %v1212, 0.0
        %v1457 = vmax.f32 %v1261, 0.0
        %v1458 = vmax.f32 %v1310, 0.0
        %v1459 = vmax.f32 %v1359, 0.0
        %v1460 = vmax.f32 %v1408, 0.0
        %v1461 = vmax.f32 %v1068, 0.0
        %v1462 = vmax.f32 %v1117, 0.0
        %v1463 = vmax.f32 %v1166, 0.0
        %v1464 = vmax.f32 %v1215, 0.0
        %v1465 = vmax.f32 %v1264, 0.0
        %v1466 = vmax.f32 %v1313, 0.0
        %v1467 = vmax.f32 %v1362, 0.0
        %v1468 = vmax.f32 %v1411, 0.0
        %v1469 = vmax.f32 %v1070, 0.0
        %v1470 = vmax.f32 %v1119, 0.0
        %v1471 = vmax.f32 %v1168, 0.0
        %v1472 = vmax.f32 %v1217, 0.0
        %v1473 = vmax.f32 %v1266, 0.0
        %v1474 = vmax.f32 %v1315, 0.0
        %v1475 = vmax.f32 %v1364, 0.0
        %v1476 = vmax.f32 %v1413, 0.0
        %v1477 = vmax.f32 %v1073, 0.0
        %v1478 = vmax.f32 %v1122, 0.0
        %v1479 = vmax.f32 %v1171, 0.0
        %v1480 = vmax.f32 %v1220, 0.0
        %v1481 = vmax.f32 %v1269, 0.0
        %v1482 = vmax.f32 %v1318, 0.0
        %v1483 = vmax.f32 %v1367, 0.0
        %v1484 = vmax.f32 %v1416, 0.0
        %v1485 = vmax.f32 %v1075, 0.0
        %v1486 = vmax.f32 %v1124, 0.0
        %v1487 = vmax.f32 %v1173, 0.0
        %v1488 = vmax.f32 %v1222, 0.0
        %v1489 = vmax.f32 %v1271, 0.0
        %v1490 = vmax.f32 %v1320, 0.0
        %v1491 = vmax.f32 %v1369, 0.0
        %v1492 = vmax.f32 %v1418, 0.0
        %v1493 = vmax.f32 %v1078, 0.0
        %v1494 = vmax.f32 %v1127, 0.0
        %v1495 = vmax.f32 %v1176, 0.0
        %v1496 = vmax.f32 %v1225, 0.0
        %v1497 = vmax.f32 %v1274, 0.0
        %v1498 = vmax.f32 %v1323, 0.0
        %v1499 = vmax.f32 %v1372, 0.0
        %v1500 = vmax.f32 %v1421, 0.0
        %v1501 = vmax.f32 %v1080, 0.0
        %v1502 = vmax.f32 %v1129, 0.0
        %v1503 = vmax.f32 %v1178, 0.0
        %v1504 = vmax.f32 %v1227, 0.0
        %v1505 = vmax.f32 %v1276, 0.0
        %v1506 = vmax.f32 %v1325, 0.0
        %v1507 = vmax.f32 %v1374, 0.0
        %v1508 = vmax.f32 %v1423, 0.0
        %v1509 = vmax.f32 %v1083, 0.0
        %v1510 = vmax.f32 %v1132, 0.0
        %v1511 = vmax.f32 %v1181, 0.0
        %v1512 = vmax.f32 %v1230, 0.0
        %v1513 = vmax.f32 %v1279, 0.0
        %v1514 = vmax.f32 %v1328, 0.0
        %v1515 = vmax.f32 %v1377, 0.0
        %v1516 = vmax.f32 %v1426, 0.0
        %v1517 = vmax.f32 %v1085, 0.0
        %v1518 = vmax.f32 %v1134, 0.0
        %v1519 = vmax.f32 %v1183, 0.0
        %v1520 = vmax.f32 %v1232, 0.0
        %v1521 = vmax.f32 %v1281, 0.0
        %v1522 = vmax.f32 %v1330, 0.0
        %v1523 = vmax.f32 %v1379, 0.0
        %v1524 = vmax.f32 %v1428, 0.0
        %v1525 = vmax.f32 %v1088, 0.0
        %v1526 = vmax.f32 %v1137, 0.0
        %v1527 = vmax.f32 %v1186, 0.0
        %v1528 = vmax.f32 %v1235, 0.0
        %v1529 = vmax.f32 %v1284, 0.0
        %v1530 = vmax.f32 %v1333, 0.0
        %v1531 = vmax.f32 %v1382, 0.0
        %v1532 = vmax.f32 %v1431, 0.0
        %v1533 = vmax.f32 %v1090, 0.0
        %v1534 = vmax.f32 %v1139, 0.0
        %v1535 = vmax.f32 %v1188, 0.0
        %v1536 = vmax.f32 %v1237, 0.0
        %v1537 = vmax.f32 %v1286, 0.0
        %v1538 = vmax.f32 %v1335, 0.0
        %v1539 = vmax.f32 %v1384, 0.0
        %v1540 = vmax.f32 %v1433, 0.0
        %v1541 = vmax.f32 %v1093, 0.0
        %v1542 = vmax.f32 %v1142, 0.0
        %v1543 = vmax.f32 %v1191, 0.0
        %v1544 = vmax.f32 %v1240, 0.0
        %v1545 = vmax.f32 %v1289, 0.0
        %v1546 = vmax.f32 %v1338, 0.0
        %v1547 = vmax.f32 %v1387, 0.0
        %v1548 = vmax.f32 %v1436, 0.0
        %v1549 = vmax.f32 %v1095, 0.0
        %v1550 = vmax.f32 %v1144, 0.0
        %v1551 = vmax.f32 %v1193, 0.0
        %v1552 = vmax.f32 %v1242, 0.0
        %v1553 = vmax.f32 %v1291, 0.0
        %v1554 = vmax.f32 %v1340, 0.0
        %v1555 = vmax.f32 %v1389, 0.0
        %v1556 = vmax.f32 %v1438, 0.0
        %v1557 = vmax.f32 %v1098, 0.0
        %v1558 = vmax.f32 %v1147, 0.0
        %v1559 = vmax.f32 %v1196, 0.0
        %v1560 = vmax.f32 %v1245, 0.0
        %v1561 = vmax.f32 %v1294, 0.0
        %v1562 = vmax.f32 %v1343, 0.0
        %v1563 = vmax.f32 %v1392, 0.0
        %v1564 = vmax.f32 %v1441, 0.0
        %v1565 = vmax.f32 %v1100, 0.0
        %v1566 = vmax.f32 %v1149, 0.0
        %v1567 = vmax.f32 %v1198, 0.0
        %v1568 = vmax.f32 %v1247, 0.0
        %v1569 = vmax.f32 %v1296, 0.0
        %v1570 = vmax.f32 %v1345, 0.0
        %v1571 = vmax.f32 %v1394, 0.0
        %v1572 = vmax.f32 %v1443, 0.0
        %v1573 = vmax.f32 %v1445, %v1453
        %v1574 = vmax.f32 %v1573, %v1461
        %v1575 = vmax.f32 %v1574, %v1469
        %v1576 = vmax.f32 %v1575, %v1477
        %v1577 = vmax.f32 %v1576, %v1485
        %v1578 = vmax.f32 %v1577, %v1493
        %v1579 = vmax.f32 %v1578, %v1501
        %v1580 = vmax.f32 %v1579, %v1509
        %v1581 = vmax.f32 %v1580, %v1517
        %v1582 = vmax.f32 %v1581, %v1525
        %v1583 = vmax.f32 %v1582, %v1533
        %v1584 = vmax.f32 %v1583, %v1541
        %v1585 = vmax.f32 %v1584, %v1549
        %v1586 = vmax.f32 %v1585, %v1557
        %v1587 = vmax.f32 %v1586, %v1565
        %v1588 = vrot.slane %v1587, 4
        %v1589 = vmax.f32 %v1587, %v1588
        %v1590 = vrot.slane %v1589, 2
        %v1591 = vmax.f32 %v1589, %v1590
        %v1592 = vrot.slane %v1591, 1
        %v1593 = vmax.f32 %v1591, %v1592
        %v1594 = vmax.f32 %v1446, %v1454
        %v1595 = vmax.f32 %v1594, %v1462
        %v1596 = vmax.f32 %v1595, %v1470
        %v1597 = vmax.f32 %v1596, %v1478
        %v1598 = vmax.f32 %v1597, %v1486
        %v1599 = vmax.f32 %v1598, %v1494
        %v1600 = vmax.f32 %v1599, %v1502
        %v1601 = vmax.f32 %v1600, %v1510
        %v1602 = vmax.f32 %v1601, %v1518
        %v1603 = vmax.f32 %v1602, %v1526
        %v1604 = vmax.f32 %v1603, %v1534
        %v1605 = vmax.f32 %v1604, %v1542
        %v1606 = vmax.f32 %v1605, %v1550
        %v1607 = vmax.f32 %v1606, %v1558
        %v1608 = vmax.f32 %v1607, %v1566
        %v1609 = vrot.slane %v1608, 4
        %v1610 = vmax.f32 %v1608, %v1609
        %v1611 = vrot.slane %v1610, 2
        %v1612 = vmax.f32 %v1610, %v1611
        %v1613 = vrot.slane %v1612, 1
        %v1614 = vmax.f32 %v1612, %v1613
        %v1615 = vmax.f32 %v1447, %v1455
        %v1616 = vmax.f32 %v1615, %v1463
        %v1617 = vmax.f32 %v1616, %v1471
        %v1618 = vmax.f32 %v1617, %v1479
        %v1619 = vmax.f32 %v1618, %v1487
        %v1620 = vmax.f32 %v1619, %v1495
        %v1621 = vmax.f32 %v1620, %v1503
        %v1622 = vmax.f32 %v1621, %v1511
        %v1623 = vmax.f32 %v1622, %v1519
        %v1624 = vmax.f32 %v1623, %v1527
        %v1625 = vmax.f32 %v1624, %v1535
        %v1626 = vmax.f32 %v1625, %v1543
        %v1627 = vmax.f32 %v1626, %v1551
        %v1628 = vmax.f32 %v1627, %v1559
        %v1629 = vmax.f32 %v1628, %v1567
        %v1630 = vrot.slane %v1629, 4
        %v1631 = vmax.f32 %v1629, %v1630
        %v1632 = vrot.slane %v1631, 2
        %v1633 = vmax.f32 %v1631, %v1632
        %v1634 = vrot.slane %v1633, 1
        %v1635 = vmax.f32 %v1633, %v1634
        %v1636 = vmax.f32 %v1448, %v1456
        %v1637 = vmax.f32 %v1636, %v1464
        %v1638 = vmax.f32 %v1637, %v1472
        %v1639 = vmax.f32 %v1638, %v1480
        %v1640 = vmax.f32 %v1639, %v1488
        %v1641 = vmax.f32 %v1640, %v1496
        %v1642 = vmax.f32 %v1641, %v1504
        %v1643 = vmax.f32 %v1642, %v1512
        %v1644 = vmax.f32 %v1643, %v1520
        %v1645 = vmax.f32 %v1644, %v1528
        %v1646 = vmax.f32 %v1645, %v1536
        %v1647 = vmax.f32 %v1646, %v1544
        %v1648 = vmax.f32 %v1647, %v1552
        %v1649 = vmax.f32 %v1648, %v1560
        %v1650 = vmax.f32 %v1649, %v1568
        %v1651 = vrot.slane %v1650, 4
        %v1652 = vmax.f32 %v1650, %v1651
        %v1653 = vrot.slane %v1652, 2
        %v1654 = vmax.f32 %v1652, %v1653
        %v1655 = vrot.slane %v1654, 1
        %v1656 = vmax.f32 %v1654, %v1655
        %v1657 = vmax.f32 %v1449, %v1457
        %v1658 = vmax.f32 %v1657, %v1465
        %v1659 = vmax.f32 %v1658, %v1473
        %v1660 = vmax.f32 %v1659, %v1481
        %v1661 = vmax.f32 %v1660, %v1489
        %v1662 = vmax.f32 %v1661, %v1497
        %v1663 = vmax.f32 %v1662, %v1505
        %v1664 = vmax.f32 %v1663, %v1513
        %v1665 = vmax.f32 %v1664, %v1521
        %v1666 = vmax.f32 %v1665, %v1529
        %v1667 = vmax.f32 %v1666, %v1537
        %v1668 = vmax.f32 %v1667, %v1545
        %v1669 = vmax.f32 %v1668, %v1553
        %v1670 = vmax.f32 %v1669, %v1561
        %v1671 = vmax.f32 %v1670, %v1569
        %v1672 = vrot.slane %v1671, 4
        %v1673 = vmax.f32 %v1671, %v1672
        %v1674 = vrot.slane %v1673, 2
        %v1675 = vmax.f32 %v1673, %v1674
        %v1676 = vrot.slane %v1675, 1
        %v1677 = vmax.f32 %v1675, %v1676
        %v1678 = vmax.f32 %v1450, %v1458
        %v1679 = vmax.f32 %v1678, %v1466
        %v1680 = vmax.f32 %v1679, %v1474
        %v1681 = vmax.f32 %v1680, %v1482
        %v1682 = vmax.f32 %v1681, %v1490
        %v1683 = vmax.f32 %v1682, %v1498
        %v1684 = vmax.f32 %v1683, %v1506
        %v1685 = vmax.f32 %v1684, %v1514
        %v1686 = vmax.f32 %v1685, %v1522
        %v1687 = vmax.f32 %v1686, %v1530
        %v1688 = vmax.f32 %v1687, %v1538
        %v1689 = vmax.f32 %v1688, %v1546
        %v1690 = vmax.f32 %v1689, %v1554
        %v1691 = vmax.f32 %v1690, %v1562
        %v1692 = vmax.f32 %v1691, %v1570
        %v1693 = vrot.slane %v1692, 4
        %v1694 = vmax.f32 %v1692, %v1693
        %v1695 = vrot.slane %v1694, 2
        %v1696 = vmax.f32 %v1694, %v1695
        %v1697 = vrot.slane %v1696, 1
        %v1698 = vmax.f32 %v1696, %v1697
        %v1699 = vmax.f32 %v1451, %v1459
        %v1700 = vmax.f32 %v1699, %v1467
        %v1701 = vmax.f32 %v1700, %v1475
        %v1702 = vmax.f32 %v1701, %v1483
        %v1703 = vmax.f32 %v1702, %v1491
        %v1704 = vmax.f32 %v1703, %v1499
        %v1705 = vmax.f32 %v1704, %v1507
        %v1706 = vmax.f32 %v1705, %v1515
        %v1707 = vmax.f32 %v1706, %v1523
        %v1708 = vmax.f32 %v1707, %v1531
        %v1709 = vmax.f32 %v1708, %v1539
        %v1710 = vmax.f32 %v1709, %v1547
        %v1711 = vmax.f32 %v1710, %v1555
        %v1712 = vmax.f32 %v1711, %v1563
        %v1713 = vmax.f32 %v1712, %v1571
        %v1714 = vrot.slane %v1713, 4
        %v1715 = vmax.f32 %v1713, %v1714
        %v1716 = vrot.slane %v1715, 2
        %v1717 = vmax.f32 %v1715, %v1716
        %v1718 = vrot.slane %v1717, 1
        %v1719 = vmax.f32 %v1717, %v1718
        %v1720 = vmax.f32 %v1452, %v1460
        %v1721 = vmax.f32 %v1720, %v1468
        %v1722 = vmax.f32 %v1721, %v1476
        %v1723 = vmax.f32 %v1722, %v1484
        %v1724 = vmax.f32 %v1723, %v1492
        %v1725 = vmax.f32 %v1724, %v1500
        %v1726 = vmax.f32 %v1725, %v1508
        %v1727 = vmax.f32 %v1726, %v1516
        %v1728 = vmax.f32 %v1727, %v1524
        %v1729 = vmax.f32 %v1728, %v1532
        %v1730 = vmax.f32 %v1729, %v1540
        %v1731 = vmax.f32 %v1730, %v1548
        %v1732 = vmax.f32 %v1731, %v1556
        %v1733 = vmax.f32 %v1732, %v1564
        %v1734 = vmax.f32 %v1733, %v1572
        %v1735 = vrot.slane %v1734, 4
        %v1736 = vmax.f32 %v1734, %v1735
        %v1737 = vrot.slane %v1736, 2
        %v1738 = vmax.f32 %v1736, %v1737
        %v1739 = vrot.slane %v1738, 1
        %v1740 = vmax.f32 %v1738, %v1739
        %v1741 = vld [vmem:[%s311] sm:$0xff]
        %v1750 = vrot.slane %v1614, 7
        %v1751 = vrot.slane %v1635, 6
        %v1752 = vrot.slane %v1656, 5
        %v1753 = vrot.slane %v1677, 4
        %v1754 = vrot.slane %v1698, 3
        %v1755 = vrot.slane %v1719, 2
        %v1756 = vrot.slane %v1740, 1
        %vm1757 = vcmask 1040384
        %v1758 = vsel %vm1757, %v1593, %v1750
        %vm1759 = vcmask 1042434
        %v1760 = vsel %vm1759, %v1751, %v1752
        %vm1761 = vcmask 1041408
        %v1762 = vsel %vm1761, %v1758, %v1760
        %vm1763 = vcmask 1044484
        %v1764 = vsel %vm1763, %v1753, %v1754
        %vm1765 = vcmask 1046534
        %v1766 = vsel %vm1765, %v1755, %v1756
        %vm1767 = vcmask 1045508
        %v1768 = vsel %vm1767, %v1764, %v1766
        %vm1769 = vcmask 1043456
        %v1770 = vsel %vm1769, %v1762, %v1768
        %v1772 = vmax.f32 %v1741, %v1770
        %1773 = vst [vmem:[%s311] sm:$0xff] %v1772
        %s1774 = sand.u32 %s196, 1
        %s1775 = scalar_lea.sflag [#allocation4], %s1774
        %s1776 = sand.u32 %s196, 1
        %s1777 = smul.addr %s1776, 8
        %s1778 = scalar_lea.vmem [#allocation5], %s1777
        // Predicated region
        $region57: #{tpu_custom_call.1} parent=47 // pred_check
          %p1779 = pneg %p206
        $region58: #{tpu_custom_call.1} parent=47 // pred_check_branch
          %1781 = sbr.rel (%p1779) target = $region60
        $region59: #{tpu_custom_call.1} parent=47 // pred_region
          %1783 = vsyncadd %s1775, 0
          %s1784 = smul.addr %s26, 8
          %s1785 = scalar_lea.hbm %s7, %s1784
          %s1787 = sshll.u32 %s1778, 4
          %s1788 = int_to_ptr.vmem [resolvable:$true] %s1787
          %s1789 = sshll.u32 %s1785, 4
          %s1790 = int_to_ptr.hbm [resolvable:$true] %s1789
          %1792 = dma.vmem_to_hbm [thread:$0]  %s1788, 128, %s1790, %s1775
        $region60: #{tpu_custom_call.1} parent=47 // pred_fallthru
          _
      $region48: #{tpu_custom_call.1} parent=5 // pred_fallthru
        _
      %p1793 = scmp.le.s32.totalorder 2, %s17
      // Predicated region
      $region61: #{tpu_custom_call.1} parent=5 // pred_check
        %p1794 = pneg %p1793
      $region62: #{tpu_custom_call.1} parent=5 // pred_check_branch
        %1796 = sbr.rel (%p1794) target = $region64
      $region63: #{tpu_custom_call.1} parent=5 // pred_region
        %s1797 = ssub.s32 %s17, 2
        // Predicated region
        $region65: #{tpu_custom_call.1} parent=63 // pred_check
          %p1798 = pneg %p212
        $region66: #{tpu_custom_call.1} parent=63 // pred_check_branch
          %1800 = sbr.rel (%p1798) target = $region68
        $region67: #{tpu_custom_call.1} parent=63 // pred_region
          %s1801 = sand.u32 %s197, 1
          %s1802 = scalar_lea.sflag [#allocation4], %s1801
          %s1803 = sand.u32 %s197, 1
          %s1804 = smul.addr %s1803, 8
          %s1805 = scalar_lea.vmem [#allocation5], %s1804
          %1807 = dma.done %s1802, 128
        $region68: #{tpu_custom_call.1} parent=63 // pred_fallthru
          _
      $region64: #{tpu_custom_call.1} parent=5 // pred_fallthru
        _
    $region6: #{tpu_custom_call.1} parent=1 // loop_footer
      %s21 = sadd.s32 1, %s17
    $region7: #{tpu_custom_call.1} parent=1 // loop_footer_branch
      %16 = sbr.rel target = $region3
    $region8: #{tpu_custom_call.1} parent=1 // loop_exit
      _
    %1808 = vsyncpa [#allocation3], 1
    %s1809 = scalar_lea.sflag [#allocation3], 1
    %1810 = vsyncpa %s1809, 1
    %1811 = vsyncpa [#allocation4], 1
    %s1812 = scalar_lea.sflag [#allocation4], 1
    %1813 = vsyncpa %s1812, 1

</llo_original>
